<compile_context>
chip_gen: v5e
topology: v5e:2x2
jax: 0.10.0
libtpu: 0.0.40
codegen_flags: <defaults>
</compile_context>

<pallas_src>
import jax
import jax.numpy as jnp
from jax.experimental import pallas as pl
from jax.experimental.pallas import tpu as pltpu

# ----------------------------- model hyper-params (small synthetic sizes) ---------------
HIDDEN = 64            # logical hidden_size (module default 300, shrunk for the example)
H_PAD = 128            # lane-padded hidden width (zero padding => exact semantics)
HID2 = 2 * HIDDEN      # 128, already lane-aligned
NUM_LAYER = 2
NUM_TASK = 3
GIN_EPS = 0.0          # GINConv default eps
N_NODES = 16           # total nodes in the batched graph
N_GRAPHS = 2
G_PAD = 8              # sublane-padded graph count (extra graph columns are all-zero)
ATOM_FEAT = 9
ATOM_PAD = 128
MORGAN_DIM = 1024
MACCS_DIM = 167
MACCS_PAD = 256


# ----------------------------- fully fused forward kernel -------------------------------
def fused_bfgnn_kernel(x_ref, adj_ref, boh_ref, boht_ref, morgan_ref, maccs_ref,
                       embw_ref, embb_ref,
                       gw1_ref, gb1_ref, gw2_ref, gb2_ref,
                       vw1_ref, vb1_ref, vw2_ref, vb2_ref,
                       pw1h_ref, pw1m_ref, pw1c_ref, pb1_ref, pw2_ref, pb2_ref,
                       pred_ref):
    f32 = jnp.float32
    bf16 = jnp.bfloat16

    boh = boh_ref[...]                 # [N, G_PAD] bf16 (0/1 exact)
    boh_t = boht_ref[...]              # [G_PAD, N] bf16 (precomputed transpose)
    adj = adj_ref[...]                 # [N, N]     bf16 (0/1 exact)

    # node embedding (dense linear stand-in for AtomEncoder; see TODO(synk))
    h = jnp.dot(x_ref[...], embw_ref[...], preferred_element_type=f32) + embb_ref[...]

    # virtualnode_embedding = nn.Embedding(1, D) initialized to zeros
    vn = jnp.zeros((G_PAD, H_PAD), f32)

    for layer in range(NUM_LAYER):
        last = layer == NUM_LAYER - 1

        # h_list[layer] = h + virtualnode_embedding[batch]
        h_l = h + jnp.dot(boh, vn.astype(bf16), preferred_element_type=f32)
        hb = h_l.astype(bf16)

        # GIN conv: (1 + eps) * h + sum_{j in N(i)} h_j   (dense adjacency matmul)
        agg = jnp.dot(adj, hb, preferred_element_type=f32)
        z = h_l + agg if GIN_EPS == 0.0 else (1.0 + GIN_EPS) * h_l + agg

        # GIN MLP (eval-mode BN folded into the linears): Lin -> ReLU -> Lin, then the
        # outer norm layer (also folded), ReLU on all but the last layer.
        t = jnp.dot(z.astype(bf16), gw1_ref[layer], preferred_element_type=f32)
        t = jnp.maximum(t + gb1_ref[layer], 0.0)
        m = jnp.dot(t.astype(bf16), gw2_ref[layer], preferred_element_type=f32)
        m = m + gb2_ref[layer]
        if not last:
            m = jnp.maximum(m, 0.0)
        # dropout == identity (eval); residual adds h_list[layer]
        h = m + h_l

        # virtual-node update: only for layer < num_layer - 1 (matches the reference;
        # the last layer's VN MLP does not exist / is never used).
        if not last:
            pooled = jnp.dot(boh_t, hb, preferred_element_type=f32)   # global_add_pool
            v = (pooled + vn).astype(bf16)
            v = jnp.dot(v, vw1_ref[layer], preferred_element_type=f32)
            v = jnp.maximum(v + vb1_ref[layer], 0.0)
            v = jnp.dot(v.astype(bf16), vw2_ref[layer], preferred_element_type=f32)
            vn = jnp.maximum(v + vb2_ref[layer], 0.0)

    # global MAX pool over nodes per graph: mask-then-reduce, one dense local result
    # (no per-row masked stores; h_graph never leaves VMEM).
    not_member = (1.0 - boh.astype(f32)) * 1e30          # [N, G_PAD]: 0 member, 1e30 other
    rows = []
    for g in range(N_GRAPHS):
        rows.append(jnp.max(h - not_member[:, g:g + 1], axis=0, keepdims=True))
    h_graph = jnp.concatenate(rows, axis=0)              # [N_GRAPHS, H_PAD]

    # predictor MLP: Linear(graph_dim, 2H) -> GELU -> Linear(2H, num_task).
    # The concat(h_graph, morgan, maccs) GEMM is split by K blocks -> no runtime concat.
    t = jnp.dot(h_graph.astype(bf16), pw1h_ref[...], preferred_element_type=f32)
    t = t + jnp.dot(morgan_ref[...], pw1m_ref[...], preferred_element_type=f32)
    t = t + jnp.dot(maccs_ref[...], pw1c_ref[...], preferred_element_type=f32)
    t = jax.nn.gelu(t + pb1_ref[...], approximate=True)  # tanh-approx GELU (EUP-friendly)
    pred_ref[...] = jnp.dot(t, pw2_ref[...], preferred_element_type=f32) + pb2_ref[...]


@jax.jit
def bfgnn_forward(x, adj, boh, boh_t, morgan, maccs, params):
    args = (x, adj, boh, boh_t, morgan, maccs,
            params['emb_w'], params['emb_b'],
            params['gw1'], params['gb1'], params['gw2'], params['gb2'],
            params['vw1'], params['vb1'], params['vw2'], params['vb2'],
            params['pw1h'], params['pw1m'], params['pw1c'], params['pb1'],
            params['pw2'], params['pb2'])
    prediction = pl.pallas_call(
        fused_bfgnn_kernel,
        out_shape=jax.ShapeDtypeStruct((N_GRAPHS, NUM_TASK), jnp.float32),
        in_specs=[pl.BlockSpec(memory_space=pltpu.MemorySpace.VMEM)] * len(args),
        out_specs=pl.BlockSpec(memory_space=pltpu.MemorySpace.VMEM),
    )(*args)
    return {'prediction': prediction}


# ----------------------------- parameter construction (deterministic) -------------------
def _fold_bn(gamma, beta, mean, var, eps=1e-5):
    scale = gamma / jnp.sqrt(var + eps)
    shift = beta - mean * scale
    return scale, shift


def init_params(key):
    ks = iter(jax.random.split(key, 64))

    def lin(fan_in, shape):
        return jax.random.normal(next(ks), shape, jnp.float32) / jnp.sqrt(fan_in)

    def rand_bn(n):
        gamma = 1.0 + 0.1 * jax.random.normal(next(ks), (n,), jnp.float32)
        beta = 0.05 * jax.random.normal(next(ks), (n,), jnp.float32)
        mean = 0.1 * jax.random.normal(next(ks), (n,), jnp.float32)
        var = 0.5 + jax.random.uniform(next(ks), (n,), jnp.float32)
        return _fold_bn(gamma, beta, mean, var)

    def pad_rows(w, rows):
        return jnp.pad(w, ((0, rows - w.shape[0]), (0, 0)))

    def pad_cols(w, cols):
        return jnp.pad(w, ((0, 0), (0, cols - w.shape[1])))

    params = {}

    # atom embedding (dense stand-in), zero-padded to [ATOM_PAD, H_PAD]
    emb_w = pad_cols(pad_rows(lin(ATOM_FEAT, (ATOM_FEAT, HIDDEN)), ATOM_PAD), H_PAD)
    params['emb_w'] = emb_w.astype(jnp.bfloat16)
    params['emb_b'] = jnp.zeros((1, H_PAD), jnp.float32)

    gw1, gb1, gw2, gb2 = [], [], [], []
    vw1, vb1, vw2, vb2 = [], [], [], []
    for layer in range(NUM_LAYER):
        # GIN MLP linear-1 + inner BN (folded); rows zero-padded HIDDEN -> H_PAD
        w1 = lin(HIDDEN, (HIDDEN, HID2))
        s1, t1 = rand_bn(HID2)
        w1 = pad_rows(w1 * s1[None, :], H_PAD)
        b1 = t1                                       # linear bias is zero; BN shift only
        # GIN MLP linear-2 + outer norm layer (folded); cols zero-padded HIDDEN -> H_PAD
        w2 = lin(HID2, (HID2, HIDDEN))
        ns, nt = rand_bn(HIDDEN)
        w2 = pad_cols(w2 * ns[None, :], H_PAD)
        b2 = pad_cols(nt[None, :], H_PAD)
        gw1.append(w1); gb1.append(b1[None, :]); gw2.append(w2); gb2.append(b2)

        # virtual-node MLP (only NUM_LAYER-1 of them exist / are used in the reference)
        if layer < NUM_LAYER - 1:
            a1 = lin(HIDDEN, (HIDDEN, HID2))
            vs1, vt1 = rand_bn(HID2)
            a1 = pad_rows(a1 * vs1[None, :], H_PAD)
            c1 = vt1
            a2 = lin(HID2, (HID2, HIDDEN))
            vs2, vt2 = rand_bn(HIDDEN)
            a2 = pad_cols(a2 * vs2[None, :], H_PAD)
            c2 = pad_cols(vt2[None, :], H_PAD)
            vw1.append(a1); vb1.append(c1[None, :]); vw2.append(a2); vb2.append(c2)

    params['gw1'] = jnp.stack(gw1).astype(jnp.bfloat16)   # [L, H_PAD, HID2]
    params['gb1'] = jnp.stack(gb1)                        # [L, 1, HID2]   f32
    params['gw2'] = jnp.stack(gw2).astype(jnp.bfloat16)   # [L, HID2, H_PAD]
    params['gb2'] = jnp.stack(gb2)                        # [L, 1, H_PAD]  f32
    params['vw1'] = jnp.stack(vw1).astype(jnp.bfloat16)   # [L-1, H_PAD, HID2]
    params['vb1'] = jnp.stack(vb1)
    params['vw2'] = jnp.stack(vw2).astype(jnp.bfloat16)
    params['vb2'] = jnp.stack(vb2)

    # predictor MLP: Linear(HIDDEN+1024+167, 2H) -> GELU -> Linear(2H, NUM_TASK),
    # first weight split along K into (graph | morgan | maccs) blocks (zero-padded rows).
    graph_dim = HIDDEN + MORGAN_DIM + MACCS_DIM
    w1p = lin(graph_dim, (graph_dim, HID2))
    params['pw1h'] = pad_rows(w1p[:HIDDEN], H_PAD).astype(jnp.bfloat16)
    params['pw1m'] = w1p[HIDDEN:HIDDEN + MORGAN_DIM].astype(jnp.bfloat16)
    params['pw1c'] = pad_rows(w1p[HIDDEN + MORGAN_DIM:], MACCS_PAD).astype(jnp.bfloat16)
    params['pb1'] = 0.01 * jax.random.normal(next(ks), (1, HID2), jnp.float32)
    params['pw2'] = lin(HID2, (HID2, NUM_TASK))                       # tiny; kept f32
    params['pb2'] = 0.01 * jax.random.normal(next(ks), (1, NUM_TASK), jnp.float32)
    return params


# ----------------------------- example run ----------------------------------------------
if __name__ == "__main__":
    key = jax.random.PRNGKey(0)
    k_param, k_x, k_adj, k_morgan, k_maccs = jax.random.split(key, 5)

    params = init_params(k_param)

    # synthetic batched graph: graph 0 -> nodes 0..6, graph 1 -> nodes 7..15
    batch = jnp.array([0] * 7 + [1] * 9, dtype=jnp.int32)
    boh_f32 = jax.nn.one_hot(batch, N_GRAPHS, dtype=jnp.float32)          # [N, G]

    x_nodes = jax.random.normal(k_x, (N_NODES, ATOM_FEAT), jnp.float32)
    x_pad = jnp.pad(x_nodes, ((0, 0), (0, ATOM_PAD - ATOM_FEAT))).astype(jnp.bfloat16)

    raw = jax.random.bernoulli(k_adj, 0.4, (N_NODES, N_NODES)).astype(jnp.float32)
    same_graph = boh_f32 @ boh_f32.T
    adj = jnp.maximum(raw, raw.T) * same_graph
    adj = (adj * (1.0 - jnp.eye(N_NODES, dtype=jnp.float32))).astype(jnp.bfloat16)

    # graph membership one-hot (sublane-padded) and its precomputed transpose
    boh = jnp.pad(boh_f32, ((0, 0), (0, G_PAD - N_GRAPHS))).astype(jnp.bfloat16)
    boh_t = boh.T                                                          # [G_PAD, N]

    morgan = jax.random.bernoulli(k_morgan, 0.1,
                                  (N_GRAPHS, MORGAN_DIM)).astype(jnp.bfloat16)
    maccs = jax.random.bernoulli(k_maccs, 0.3,
                                 (N_GRAPHS, MACCS_DIM)).astype(jnp.float32)
    maccs = jnp.pad(maccs, ((0, 0), (0, MACCS_PAD - MACCS_DIM))).astype(jnp.bfloat16)

    out = bfgnn_forward(x_pad, adj, boh, boh_t, morgan, maccs, params)
    pred = jax.block_until_ready(out['prediction'])

    assert pred.shape == (N_GRAPHS, NUM_TASK)
    assert bool(jnp.all(jnp.isfinite(pred)))
    print("KERNEL_OK")
</pallas_src>

<mosaic_0001>
module attributes {stable_mosaic.version = 11 : i64} {
  func.func @fused_bfgnn_kernel(%arg0: memref<16x128xbf16, #tpu.memory_space<vmem>>, %arg1: memref<16x16xbf16, #tpu.memory_space<vmem>>, %arg2: memref<16x8xbf16, #tpu.memory_space<vmem>>, %arg3: memref<8x16xbf16, #tpu.memory_space<vmem>>, %arg4: memref<2x1024xbf16, #tpu.memory_space<vmem>>, %arg5: memref<2x256xbf16, #tpu.memory_space<vmem>>, %arg6: memref<128x128xbf16, #tpu.memory_space<vmem>>, %arg7: memref<1x128xf32, #tpu.memory_space<vmem>>, %arg8: memref<2x128x128xbf16, #tpu.memory_space<vmem>>, %arg9: memref<2x1x128xf32, #tpu.memory_space<vmem>>, %arg10: memref<2x128x128xbf16, #tpu.memory_space<vmem>>, %arg11: memref<2x1x128xf32, #tpu.memory_space<vmem>>, %arg12: memref<1x128x128xbf16, #tpu.memory_space<vmem>>, %arg13: memref<1x1x128xf32, #tpu.memory_space<vmem>>, %arg14: memref<1x128x128xbf16, #tpu.memory_space<vmem>>, %arg15: memref<1x1x128xf32, #tpu.memory_space<vmem>>, %arg16: memref<128x128xbf16, #tpu.memory_space<vmem>>, %arg17: memref<1024x128xbf16, #tpu.memory_space<vmem>>, %arg18: memref<256x128xbf16, #tpu.memory_space<vmem>>, %arg19: memref<1x128xf32, #tpu.memory_space<vmem>>, %arg20: memref<128x3xf32, #tpu.memory_space<vmem>>, %arg21: memref<1x3xf32, #tpu.memory_space<vmem>>, %arg22: memref<2x3xf32, #tpu.memory_space<vmem>>) attributes {dimension_semantics = [], scalar_prefetch = 0 : i64, scratch_operands = 0 : i64, tpu.core_type = #tpu.core_type<tc>} {
    %c0 = arith.constant 0 : index
    %c0_0 = arith.constant 0 : index
    %0 = vector.load %arg2[%c0, %c0_0] : memref<16x8xbf16, #tpu.memory_space<vmem>>, vector<16x8xbf16>
    %c0_1 = arith.constant 0 : index
    %c0_2 = arith.constant 0 : index
    %1 = vector.load %arg3[%c0_1, %c0_2] : memref<8x16xbf16, #tpu.memory_space<vmem>>, vector<8x16xbf16>
    %c0_3 = arith.constant 0 : index
    %c0_4 = arith.constant 0 : index
    %2 = vector.load %arg1[%c0_3, %c0_4] : memref<16x16xbf16, #tpu.memory_space<vmem>>, vector<16x16xbf16>
    %c0_5 = arith.constant 0 : index
    %c0_6 = arith.constant 0 : index
    %3 = vector.load %arg0[%c0_5, %c0_6] : memref<16x128xbf16, #tpu.memory_space<vmem>>, vector<16x128xbf16>
    %c0_7 = arith.constant 0 : index
    %c0_8 = arith.constant 0 : index
    %4 = vector.load %arg6[%c0_7, %c0_8] : memref<128x128xbf16, #tpu.memory_space<vmem>>, vector<128x128xbf16>
    %cst = arith.constant dense<0.000000e+00> : vector<16x128xf32>
    %5 = tpu.matmul %3, %4, %cst {dimension_numbers = #tpu.dot_dimension_numbers<[1], [0], [0], [1], [0, 0, 1, 1], [], []>} : vector<16x128xbf16>, vector<128x128xbf16>, vector<16x128xf32> -> vector<16x128xf32>
    %c0_9 = arith.constant 0 : index
    %c0_10 = arith.constant 0 : index
    %6 = vector.load %arg7[%c0_9, %c0_10] : memref<1x128xf32, #tpu.memory_space<vmem>>, vector<1x128xf32>
    %7 = vector.broadcast %6 : vector<1x128xf32> to vector<16x128xf32>
    %8 = arith.addf %5, %7 : vector<16x128xf32>
    %cst_11 = arith.constant 0.000000e+00 : f32
    %9 = vector.broadcast %cst_11 : f32 to vector<8x128xf32>
    %10 = arith.truncf %9 : vector<8x128xf32> to vector<8x128xbf16>
    %cst_12 = arith.constant dense<0.000000e+00> : vector<16x128xf32>
    %11 = tpu.matmul %0, %10, %cst_12 {dimension_numbers = #tpu.dot_dimension_numbers<[1], [0], [0], [1], [0, 0, 1, 1], [], []>} : vector<16x8xbf16>, vector<8x128xbf16>, vector<16x128xf32> -> vector<16x128xf32>
    %12 = arith.addf %8, %11 : vector<16x128xf32>
    %13 = arith.truncf %12 : vector<16x128xf32> to vector<16x128xbf16>
    %cst_13 = arith.constant dense<0.000000e+00> : vector<16x128xf32>
    %14 = tpu.matmul %2, %13, %cst_13 {dimension_numbers = #tpu.dot_dimension_numbers<[1], [0], [0], [1], [0, 0, 1, 1], [], []>} : vector<16x16xbf16>, vector<16x128xbf16>, vector<16x128xf32> -> vector<16x128xf32>
    %15 = arith.addf %12, %14 : vector<16x128xf32>
    %16 = arith.truncf %15 : vector<16x128xf32> to vector<16x128xbf16>
    %c0_14 = arith.constant 0 : index
    %c0_15 = arith.constant 0 : index
    %c0_16 = arith.constant 0 : index
    %17 = vector.load %arg8[%c0_14, %c0_15, %c0_16] : memref<2x128x128xbf16, #tpu.memory_space<vmem>>, vector<1x128x128xbf16>
    %18 = vector.shape_cast %17 : vector<1x128x128xbf16> to vector<128x128xbf16>
    %cst_17 = arith.constant dense<0.000000e+00> : vector<16x128xf32>
    %19 = tpu.matmul %16, %18, %cst_17 {dimension_numbers = #tpu.dot_dimension_numbers<[1], [0], [0], [1], [0, 0, 1, 1], [], []>} : vector<16x128xbf16>, vector<128x128xbf16>, vector<16x128xf32> -> vector<16x128xf32>
    %c0_18 = arith.constant 0 : index
    %c0_19 = arith.constant 0 : index
    %c0_20 = arith.constant 0 : index
    %20 = vector.load %arg9[%c0_18, %c0_19, %c0_20] : memref<2x1x128xf32, #tpu.memory_space<vmem>>, vector<1x1x128xf32>
    %21 = vector.shape_cast %20 : vector<1x1x128xf32> to vector<1x128xf32>
    %22 = vector.broadcast %21 : vector<1x128xf32> to vector<16x128xf32>
    %23 = arith.addf %19, %22 : vector<16x128xf32>
    %cst_21 = arith.constant 0.000000e+00 : f32
    %24 = vector.broadcast %cst_21 : f32 to vector<16x128xf32>
    %25 = arith.maximumf %23, %24 : vector<16x128xf32>
    %26 = arith.truncf %25 : vector<16x128xf32> to vector<16x128xbf16>
    %c0_22 = arith.constant 0 : index
    %c0_23 = arith.constant 0 : index
    %c0_24 = arith.constant 0 : index
    %27 = vector.load %arg10[%c0_22, %c0_23, %c0_24] : memref<2x128x128xbf16, #tpu.memory_space<vmem>>, vector<1x128x128xbf16>
    %28 = vector.shape_cast %27 : vector<1x128x128xbf16> to vector<128x128xbf16>
    %cst_25 = arith.constant dense<0.000000e+00> : vector<16x128xf32>
    %29 = tpu.matmul %26, %28, %cst_25 {dimension_numbers = #tpu.dot_dimension_numbers<[1], [0], [0], [1], [0, 0, 1, 1], [], []>} : vector<16x128xbf16>, vector<128x128xbf16>, vector<16x128xf32> -> vector<16x128xf32>
    %c0_26 = arith.constant 0 : index
    %c0_27 = arith.constant 0 : index
    %c0_28 = arith.constant 0 : index
    %30 = vector.load %arg11[%c0_26, %c0_27, %c0_28] : memref<2x1x128xf32, #tpu.memory_space<vmem>>, vector<1x1x128xf32>
    %31 = vector.shape_cast %30 : vector<1x1x128xf32> to vector<1x128xf32>
    %32 = vector.broadcast %31 : vector<1x128xf32> to vector<16x128xf32>
    %33 = arith.addf %29, %32 : vector<16x128xf32>
    %cst_29 = arith.constant 0.000000e+00 : f32
    %34 = vector.broadcast %cst_29 : f32 to vector<16x128xf32>
    %35 = arith.maximumf %33, %34 : vector<16x128xf32>
    %36 = arith.addf %35, %12 : vector<16x128xf32>
    %cst_30 = arith.constant dense<0.000000e+00> : vector<8x128xf32>
    %37 = tpu.matmul %1, %13, %cst_30 {dimension_numbers = #tpu.dot_dimension_numbers<[1], [0], [0], [1], [0, 0, 1, 1], [], []>} : vector<8x16xbf16>, vector<16x128xbf16>, vector<8x128xf32> -> vector<8x128xf32>
    %38 = arith.addf %37, %9 : vector<8x128xf32>
    %39 = arith.truncf %38 : vector<8x128xf32> to vector<8x128xbf16>
    %c0_31 = arith.constant 0 : index
    %c0_32 = arith.constant 0 : index
    %c0_33 = arith.constant 0 : index
    %40 = vector.load %arg12[%c0_31, %c0_32, %c0_33] : memref<1x128x128xbf16, #tpu.memory_space<vmem>>, vector<1x128x128xbf16>
    %41 = vector.shape_cast %40 : vector<1x128x128xbf16> to vector<128x128xbf16>
    %cst_34 = arith.constant dense<0.000000e+00> : vector<8x128xf32>
    %42 = tpu.matmul %39, %41, %cst_34 {dimension_numbers = #tpu.dot_dimension_numbers<[1], [0], [0], [1], [0, 0, 1, 1], [], []>} : vector<8x128xbf16>, vector<128x128xbf16>, vector<8x128xf32> -> vector<8x128xf32>
    %c0_35 = arith.constant 0 : index
    %c0_36 = arith.constant 0 : index
    %c0_37 = arith.constant 0 : index
    %43 = vector.load %arg13[%c0_35, %c0_36, %c0_37] : memref<1x1x128xf32, #tpu.memory_space<vmem>>, vector<1x1x128xf32>
    %44 = vector.shape_cast %43 : vector<1x1x128xf32> to vector<1x128xf32>
    %45 = vector.broadcast %44 : vector<1x128xf32> to vector<8x128xf32>
    %46 = arith.addf %42, %45 : vector<8x128xf32>
    %cst_38 = arith.constant 0.000000e+00 : f32
    %47 = vector.broadcast %cst_38 : f32 to vector<8x128xf32>
    %48 = arith.maximumf %46, %47 : vector<8x128xf32>
    %49 = arith.truncf %48 : vector<8x128xf32> to vector<8x128xbf16>
    %c0_39 = arith.constant 0 : index
    %c0_40 = arith.constant 0 : index
    %c0_41 = arith.constant 0 : index
    %50 = vector.load %arg14[%c0_39, %c0_40, %c0_41] : memref<1x128x128xbf16, #tpu.memory_space<vmem>>, vector<1x128x128xbf16>
    %51 = vector.shape_cast %50 : vector<1x128x128xbf16> to vector<128x128xbf16>
    %cst_42 = arith.constant dense<0.000000e+00> : vector<8x128xf32>
    %52 = tpu.matmul %49, %51, %cst_42 {dimension_numbers = #tpu.dot_dimension_numbers<[1], [0], [0], [1], [0, 0, 1, 1], [], []>} : vector<8x128xbf16>, vector<128x128xbf16>, vector<8x128xf32> -> vector<8x128xf32>
    %c0_43 = arith.constant 0 : index
    %c0_44 = arith.constant 0 : index
    %c0_45 = arith.constant 0 : index
    %53 = vector.load %arg15[%c0_43, %c0_44, %c0_45] : memref<1x1x128xf32, #tpu.memory_space<vmem>>, vector<1x1x128xf32>
    %54 = vector.shape_cast %53 : vector<1x1x128xf32> to vector<1x128xf32>
    %55 = vector.broadcast %54 : vector<1x128xf32> to vector<8x128xf32>
    %56 = arith.addf %52, %55 : vector<8x128xf32>
    %cst_46 = arith.constant 0.000000e+00 : f32
    %57 = vector.broadcast %cst_46 : f32 to vector<8x128xf32>
    %58 = arith.maximumf %56, %57 : vector<8x128xf32>
    %59 = arith.truncf %58 : vector<8x128xf32> to vector<8x128xbf16>
    %cst_47 = arith.constant dense<0.000000e+00> : vector<16x128xf32>
    %60 = tpu.matmul %0, %59, %cst_47 {dimension_numbers = #tpu.dot_dimension_numbers<[1], [0], [0], [1], [0, 0, 1, 1], [], []>} : vector<16x8xbf16>, vector<8x128xbf16>, vector<16x128xf32> -> vector<16x128xf32>
    %61 = arith.addf %36, %60 : vector<16x128xf32>
    %62 = arith.truncf %61 : vector<16x128xf32> to vector<16x128xbf16>
    %cst_48 = arith.constant dense<0.000000e+00> : vector<16x128xf32>
    %63 = tpu.matmul %2, %62, %cst_48 {dimension_numbers = #tpu.dot_dimension_numbers<[1], [0], [0], [1], [0, 0, 1, 1], [], []>} : vector<16x16xbf16>, vector<16x128xbf16>, vector<16x128xf32> -> vector<16x128xf32>
    %64 = arith.addf %61, %63 : vector<16x128xf32>
    %65 = arith.truncf %64 : vector<16x128xf32> to vector<16x128xbf16>
    %c1 = arith.constant 1 : index
    %c0_49 = arith.constant 0 : index
    %c0_50 = arith.constant 0 : index
    %66 = vector.load %arg8[%c1, %c0_49, %c0_50] : memref<2x128x128xbf16, #tpu.memory_space<vmem>>, vector<1x128x128xbf16>
    %67 = vector.shape_cast %66 : vector<1x128x128xbf16> to vector<128x128xbf16>
    %cst_51 = arith.constant dense<0.000000e+00> : vector<16x128xf32>
    %68 = tpu.matmul %65, %67, %cst_51 {dimension_numbers = #tpu.dot_dimension_numbers<[1], [0], [0], [1], [0, 0, 1, 1], [], []>} : vector<16x128xbf16>, vector<128x128xbf16>, vector<16x128xf32> -> vector<16x128xf32>
    %c1_52 = arith.constant 1 : index
    %c0_53 = arith.constant 0 : index
    %c0_54 = arith.constant 0 : index
    %69 = vector.load %arg9[%c1_52, %c0_53, %c0_54] : memref<2x1x128xf32, #tpu.memory_space<vmem>>, vector<1x1x128xf32>
    %70 = vector.shape_cast %69 : vector<1x1x128xf32> to vector<1x128xf32>
    %71 = vector.broadcast %70 : vector<1x128xf32> to vector<16x128xf32>
    %72 = arith.addf %68, %71 : vector<16x128xf32>
    %cst_55 = arith.constant 0.000000e+00 : f32
    %73 = vector.broadcast %cst_55 : f32 to vector<16x128xf32>
    %74 = arith.maximumf %72, %73 : vector<16x128xf32>
    %75 = arith.truncf %74 : vector<16x128xf32> to vector<16x128xbf16>
    %c1_56 = arith.constant 1 : index
    %c0_57 = arith.constant 0 : index
    %c0_58 = arith.constant 0 : index
    %76 = vector.load %arg10[%c1_56, %c0_57, %c0_58] : memref<2x128x128xbf16, #tpu.memory_space<vmem>>, vector<1x128x128xbf16>
    %77 = vector.shape_cast %76 : vector<1x128x128xbf16> to vector<128x128xbf16>
    %cst_59 = arith.constant dense<0.000000e+00> : vector<16x128xf32>
    %78 = tpu.matmul %75, %77, %cst_59 {dimension_numbers = #tpu.dot_dimension_numbers<[1], [0], [0], [1], [0, 0, 1, 1], [], []>} : vector<16x128xbf16>, vector<128x128xbf16>, vector<16x128xf32> -> vector<16x128xf32>
    %c1_60 = arith.constant 1 : index
    %c0_61 = arith.constant 0 : index
    %c0_62 = arith.constant 0 : index
    %79 = vector.load %arg11[%c1_60, %c0_61, %c0_62] : memref<2x1x128xf32, #tpu.memory_space<vmem>>, vector<1x1x128xf32>
    %80 = vector.shape_cast %79 : vector<1x1x128xf32> to vector<1x128xf32>
    %81 = vector.broadcast %80 : vector<1x128xf32> to vector<16x128xf32>
    %82 = arith.addf %78, %81 : vector<16x128xf32>
    %83 = arith.addf %82, %61 : vector<16x128xf32>
    %84 = arith.extf %0 : vector<16x8xbf16> to vector<16x8xf32>
    %cst_63 = arith.constant 1.000000e+00 : f32
    %85 = vector.broadcast %cst_63 : f32 to vector<16x8xf32>
    %86 = arith.subf %85, %84 : vector<16x8xf32>
    %cst_64 = arith.constant 1.000000e+30 : f32
    %87 = vector.broadcast %cst_64 : f32 to vector<16x8xf32>
    %88 = arith.mulf %86, %87 : vector<16x8xf32>
    %89 = vector.extract_strided_slice %88 {offsets = [0, 0], sizes = [16, 1], strides = [1, 1]} : vector<16x8xf32> to vector<16x1xf32>
    %90 = vector.broadcast %89 : vector<16x1xf32> to vector<16x128xf32>
    %91 = arith.subf %83, %90 : vector<16x128xf32>
    %cst_65 = arith.constant dense<0xFF800000> : vector<128xf32>
    %92 = vector.multi_reduction <maximumf>, %91, %cst_65 [0] : vector<16x128xf32> to vector<128xf32>
    %93 = vector.shape_cast %92 : vector<128xf32> to vector<1x128xf32>
    %94 = vector.extract_strided_slice %88 {offsets = [0, 1], sizes = [16, 1], strides = [1, 1]} : vector<16x8xf32> to vector<16x1xf32>
    %95 = vector.broadcast %94 : vector<16x1xf32> to vector<16x128xf32>
    %96 = arith.subf %83, %95 : vector<16x128xf32>
    %cst_66 = arith.constant dense<0xFF800000> : vector<128xf32>
    %97 = vector.multi_reduction <maximumf>, %96, %cst_66 [0] : vector<16x128xf32> to vector<128xf32>
    %98 = vector.shape_cast %97 : vector<128xf32> to vector<1x128xf32>
    %99 = tpu.concatenate %93, %98 in 0 : vector<1x128xf32>, vector<1x128xf32> -> vector<2x128xf32>
    %100 = arith.truncf %99 : vector<2x128xf32> to vector<2x128xbf16>
    %c0_67 = arith.constant 0 : index
    %c0_68 = arith.constant 0 : index
    %101 = vector.load %arg16[%c0_67, %c0_68] : memref<128x128xbf16, #tpu.memory_space<vmem>>, vector<128x128xbf16>
    %cst_69 = arith.constant dense<0.000000e+00> : vector<2x128xf32>
    %102 = tpu.matmul %100, %101, %cst_69 {dimension_numbers = #tpu.dot_dimension_numbers<[1], [0], [0], [1], [0, 0, 1, 1], [], []>} : vector<2x128xbf16>, vector<128x128xbf16>, vector<2x128xf32> -> vector<2x128xf32>
    %c0_70 = arith.constant 0 : index
    %c0_71 = arith.constant 0 : index
    %103 = vector.load %arg4[%c0_70, %c0_71] : memref<2x1024xbf16, #tpu.memory_space<vmem>>, vector<2x1024xbf16>
    %c0_72 = arith.constant 0 : index
    %c0_73 = arith.constant 0 : index
    %104 = vector.load %arg17[%c0_72, %c0_73] : memref<1024x128xbf16, #tpu.memory_space<vmem>>, vector<1024x128xbf16>
    %cst_74 = arith.constant dense<0.000000e+00> : vector<2x128xf32>
    %105 = tpu.matmul %103, %104, %cst_74 {dimension_numbers = #tpu.dot_dimension_numbers<[1], [0], [0], [1], [0, 0, 1, 1], [], []>} : vector<2x1024xbf16>, vector<1024x128xbf16>, vector<2x128xf32> -> vector<2x128xf32>
    %106 = arith.addf %102, %105 : vector<2x128xf32>
    %c0_75 = arith.constant 0 : index
    %c0_76 = arith.constant 0 : index
    %107 = vector.load %arg5[%c0_75, %c0_76] : memref<2x256xbf16, #tpu.memory_space<vmem>>, vector<2x256xbf16>
    %c0_77 = arith.constant 0 : index
    %c0_78 = arith.constant 0 : index
    %108 = vector.load %arg18[%c0_77, %c0_78] : memref<256x128xbf16, #tpu.memory_space<vmem>>, vector<256x128xbf16>
    %cst_79 = arith.constant dense<0.000000e+00> : vector<2x128xf32>
    %109 = tpu.matmul %107, %108, %cst_79 {dimension_numbers = #tpu.dot_dimension_numbers<[1], [0], [0], [1], [0, 0, 1, 1], [], []>} : vector<2x256xbf16>, vector<256x128xbf16>, vector<2x128xf32> -> vector<2x128xf32>
    %110 = arith.addf %106, %109 : vector<2x128xf32>
    %c0_80 = arith.constant 0 : index
    %c0_81 = arith.constant 0 : index
    %111 = vector.load %arg19[%c0_80, %c0_81] : memref<1x128xf32, #tpu.memory_space<vmem>>, vector<1x128xf32>
    %112 = vector.broadcast %111 : vector<1x128xf32> to vector<2x128xf32>
    %113 = arith.addf %110, %112 : vector<2x128xf32>
    %114 = arith.mulf %113, %113 : vector<2x128xf32>
    %115 = arith.mulf %113, %114 : vector<2x128xf32>
    %cst_82 = arith.constant 4.471500e-02 : f32
    %116 = vector.broadcast %cst_82 : f32 to vector<2x128xf32>
    %117 = arith.mulf %116, %115 : vector<2x128xf32>
    %118 = arith.addf %113, %117 : vector<2x128xf32>
    %cst_83 = arith.constant 0.797884583 : f32
    %119 = vector.broadcast %cst_83 : f32 to vector<2x128xf32>
    %120 = arith.mulf %119, %118 : vector<2x128xf32>
    %121 = math.tanh %120 : vector<2x128xf32>
    %cst_84 = arith.constant 1.000000e+00 : f32
    %122 = vector.broadcast %cst_84 : f32 to vector<2x128xf32>
    %123 = arith.addf %122, %121 : vector<2x128xf32>
    %cst_85 = arith.constant 5.000000e-01 : f32
    %124 = vector.broadcast %cst_85 : f32 to vector<2x128xf32>
    %125 = arith.mulf %124, %123 : vector<2x128xf32>
    %126 = arith.mulf %113, %125 : vector<2x128xf32>
    %c0_86 = arith.constant 0 : index
    %c0_87 = arith.constant 0 : index
    %127 = vector.load %arg20[%c0_86, %c0_87] : memref<128x3xf32, #tpu.memory_space<vmem>>, vector<128x3xf32>
    %cst_88 = arith.constant dense<0.000000e+00> : vector<2x3xf32>
    %128 = tpu.matmul %126, %127, %cst_88 {dimension_numbers = #tpu.dot_dimension_numbers<[1], [0], [0], [1], [0, 0, 1, 1], [], []>} : vector<2x128xf32>, vector<128x3xf32>, vector<2x3xf32> -> vector<2x3xf32>
    %c0_89 = arith.constant 0 : index
    %c0_90 = arith.constant 0 : index
    %129 = vector.load %arg21[%c0_89, %c0_90] : memref<1x3xf32, #tpu.memory_space<vmem>>, vector<1x3xf32>
    %130 = vector.broadcast %129 : vector<1x3xf32> to vector<2x3xf32>
    %131 = arith.addf %128, %130 : vector<2x3xf32>
    %c0_91 = arith.constant 0 : index
    %c0_92 = arith.constant 0 : index
    %132 = vector.load %arg22[%c0_91, %c0_92] : memref<2x3xf32, #tpu.memory_space<vmem>>, vector<2x3xf32>
    tpu.vector_store %arg22[%c0_91, %c0_92], %131 {strides = array<i32>} : memref<2x3xf32, #tpu.memory_space<vmem>>, vector<2x3xf32>,
    return
  }
}

</mosaic_0001>

<llo_original>
// kernel: bfgnn_forward.1
$region0: #{bfgnn_forward.1}
  #allocation0 [shape = 'u32[]', space=smem, size = 0x4, offset = 0x4, fixed_abs, tag = 'smem constant byte address 0x4 - core index']
  #allocation1 [shape = 'u32[72,128]{1,0:T(1,128)}', space=vmem, size = 0x9000, scoped, tag = 'internal scratch']
  %s0 = inlined_call_operand.vmem [shape: bf16[16,128], index: 0, kind: input, shape index: {}]
  %s1 = inlined_call_operand.hbm [shape: bf16[16,16], index: 1, kind: input, shape index: {}]
  %s2 = inlined_call_operand.vmem [shape: bf16[16,8], index: 2, kind: input, shape index: {}]
  %s3 = inlined_call_operand.vmem [shape: bf16[8,16], index: 3, kind: input, shape index: {}]
  %s4 = inlined_call_operand.hbm [shape: bf16[2,1024], index: 4, kind: input, shape index: {}]
  %s5 = inlined_call_operand.vmem [shape: bf16[2,256], index: 5, kind: input, shape index: {}]
  %s6 = inlined_call_operand.hbm [shape: bf16[128,128], index: 6, kind: input, shape index: {}]
  %s7 = inlined_call_operand.vmem [shape: f32[1,128], index: 7, kind: input, shape index: {}]
  %s8 = inlined_call_operand.vmem [shape: bf16[2,128,128], index: 8, kind: input, shape index: {}]
  %s9 = inlined_call_operand.vmem [shape: f32[2,1,128], index: 9, kind: input, shape index: {}]
  %s10 = inlined_call_operand.hbm [shape: bf16[2,128,128], index: 10, kind: input, shape index: {}]
  %s11 = inlined_call_operand.vmem [shape: f32[2,1,128], index: 11, kind: input, shape index: {}]
  %s12 = inlined_call_operand.hbm [shape: bf16[1,128,128], index: 12, kind: input, shape index: {}]
  %s13 = inlined_call_operand.vmem [shape: f32[1,1,128], index: 13, kind: input, shape index: {}]
  %s14 = inlined_call_operand.hbm [shape: bf16[1,128,128], index: 14, kind: input, shape index: {}]
  %s15 = inlined_call_operand.vmem [shape: f32[1,1,128], index: 15, kind: input, shape index: {}]
  %s16 = inlined_call_operand.hbm [shape: bf16[128,128], index: 16, kind: input, shape index: {}]
  %s17 = inlined_call_operand.hbm [shape: bf16[1024,128], index: 17, kind: input, shape index: {}]
  %s18 = inlined_call_operand.hbm [shape: bf16[256,128], index: 18, kind: input, shape index: {}]
  %s19 = inlined_call_operand.vmem [shape: f32[1,128], index: 19, kind: input, shape index: {}]
  %s20 = inlined_call_operand.vmem [shape: f32[128,3], index: 20, kind: input, shape index: {}]
  %s21 = inlined_call_operand.vmem [shape: f32[1,3], index: 21, kind: input, shape index: {}]
  %s22 = inlined_call_operand.hbm [shape: f32[2,3], index: 22, kind: output, shape index: {}]
  %s23 = sld [smem:[#allocation0]]
  $region134: #{bfgnn_forward.1} parent=0
    _
  %s25 = ssub.s32 1, %s23
  %s26 = scalar_select 0, %s25, %s23
  $region1: #{bfgnn_forward.1} parent=0
    #allocation2 [shape = 'u8[4096]{0}', space=vmem, size = 0x1000, scoped, tag = 'input window, operand 1, single buffered']
    #allocation3 [shape = 's32[1]{0}', space=sflag, size = 0x4, scoped, tag = 'scoped memory for bfgnn_forward.1']
    #allocation4 [shape = 's32[1]{0}', space=sflag, size = 0x4, scoped, tag = 'scoped memory for bfgnn_forward.1']
    #allocation5 [shape = 'u8[4096]{0}', space=vmem, size = 0x1000, scoped, tag = 'input window, operand 4, single buffered']
    #allocation6 [shape = 's32[1]{0}', space=sflag, size = 0x4, scoped, tag = 'scoped memory for bfgnn_forward.1']
    #allocation7 [shape = 'u8[32768]{0}', space=vmem, size = 0x8000, scoped, tag = 'input window, operand 6, single buffered']
    #allocation8 [shape = 'u8[65536]{0}', space=vmem, size = 0x10000, scoped, tag = 'input window, operand 10, single buffered']
    #allocation9 [shape = 's32[1]{0}', space=sflag, size = 0x4, scoped, tag = 'scoped memory for bfgnn_forward.1']
    #allocation10 [shape = 'u8[32768]{0}', space=vmem, size = 0x8000, scoped, tag = 'input window, operand 12, single buffered']
    #allocation11 [shape = 'u8[32768]{0}', space=vmem, size = 0x8000, scoped, tag = 'input window, operand 14, single buffered']
    #allocation12 [shape = 's32[1]{0}', space=sflag, size = 0x4, scoped, tag = 'scoped memory for bfgnn_forward.1']
    #allocation13 [shape = 'u8[32768]{0}', space=vmem, size = 0x8000, scoped, tag = 'input window, operand 16, single buffered']
    #allocation14 [shape = 'u8[262144]{0}', space=vmem, size = 0x40000, scoped, tag = 'input window, operand 17, single buffered']
    #allocation15 [shape = 's32[1]{0}', space=sflag, size = 0x4, scoped, tag = 'scoped memory for bfgnn_forward.1']
    #allocation16 [shape = 'u8[65536]{0}', space=vmem, size = 0x10000, scoped, tag = 'input window, operand 18, single buffered']
    #allocation17 [shape = 'u8[1024]{0}', space=vmem, size = 0x400, scoped, tag = 'output window, operand 0, single buffered']
    %27 = vsyncpa [#allocation3], 0
    %28 = vsyncpa [#allocation6], 0
    %29 = vsyncpa [#allocation9], 0
    %30 = vsyncpa [#allocation12], 0
    %31 = vsyncpa [#allocation15], 0
    %32 = vsyncpa [#allocation4], 0
    // Predicated region
    $region2: #{bfgnn_forward.1} parent=1 // pred_check
      _
    $region3: #{bfgnn_forward.1} parent=1 // pred_check_branch
      %34 = sbr.rel (0) target = $region5
    $region4: #{bfgnn_forward.1} parent=1 // pred_region
      _
    $region5: #{bfgnn_forward.1} parent=1 // pred_fallthru
      _
    // Predicated region
    $region6: #{bfgnn_forward.1} parent=1 // pred_check
      _
    $region7: #{bfgnn_forward.1} parent=1 // pred_check_branch
      %36 = sbr.rel (0) target = $region9
    $region8: #{bfgnn_forward.1} parent=1 // pred_region
      %38 = vsyncadd [#allocation3], 0
      %s39 = sshll.u32 %s1, 4
      %s40 = int_to_ptr.hbm [resolvable:$true] %s39
      %s41 = sshll.u32 [#allocation2], 4
      %s42 = int_to_ptr.vmem [resolvable:$true] %s41
      %47 = dma.hbm_to_vmem [thread:$0]  %s40, 128, %s42, [#allocation3], 64, 64, 4
    $region9: #{bfgnn_forward.1} parent=1 // pred_fallthru
      _
    // Predicated region
    $region10: #{bfgnn_forward.1} parent=1 // pred_check
      _
    $region11: #{bfgnn_forward.1} parent=1 // pred_check_branch
      %49 = sbr.rel (0) target = $region13
    $region12: #{bfgnn_forward.1} parent=1 // pred_region
      _
    $region13: #{bfgnn_forward.1} parent=1 // pred_fallthru
      _
    // Predicated region
    $region14: #{bfgnn_forward.1} parent=1 // pred_check
      _
    $region15: #{bfgnn_forward.1} parent=1 // pred_check_branch
      %51 = sbr.rel (0) target = $region17
    $region16: #{bfgnn_forward.1} parent=1 // pred_region
      _
    $region17: #{bfgnn_forward.1} parent=1 // pred_fallthru
      _
    // Predicated region
    $region18: #{bfgnn_forward.1} parent=1 // pred_check
      _
    $region19: #{bfgnn_forward.1} parent=1 // pred_check_branch
      %53 = sbr.rel (0) target = $region21
    $region20: #{bfgnn_forward.1} parent=1 // pred_region
      %55 = vsyncadd [#allocation6], 0
      %s57 = sshll.u32 %s4, 4
      %s58 = int_to_ptr.hbm [resolvable:$true] %s57
      %s59 = sshll.u32 [#allocation5], 4
      %s60 = int_to_ptr.vmem [resolvable:$true] %s59
      %62 = dma.hbm_to_vmem [thread:$0]  %s58, 128, %s60, [#allocation6]
    $region21: #{bfgnn_forward.1} parent=1 // pred_fallthru
      _
    // Predicated region
    $region22: #{bfgnn_forward.1} parent=1 // pred_check
      _
    $region23: #{bfgnn_forward.1} parent=1 // pred_check_branch
      %64 = sbr.rel (0) target = $region25
    $region24: #{bfgnn_forward.1} parent=1 // pred_region
      _
    $region25: #{bfgnn_forward.1} parent=1 // pred_fallthru
      _
    // Predicated region
    $region26: #{bfgnn_forward.1} parent=1 // pred_check
      _
    $region27: #{bfgnn_forward.1} parent=1 // pred_check_branch
      %66 = sbr.rel (0) target = $region29
    $region28: #{bfgnn_forward.1} parent=1 // pred_region
      %68 = vsyncadd [#allocation6], 0
      %s69 = sshll.u32 %s6, 4
      %s70 = int_to_ptr.hbm [resolvable:$true] %s69
      %s71 = sshll.u32 [#allocation7], 4
      %s72 = int_to_ptr.vmem [resolvable:$true] %s71
      %77 = dma.hbm_to_vmem [thread:$0]  %s70, 1024, %s72, [#allocation6], 64, 64, 4
    $region29: #{bfgnn_forward.1} parent=1 // pred_fallthru
      _
    // Predicated region
    $region30: #{bfgnn_forward.1} parent=1 // pred_check
      _
    $region31: #{bfgnn_forward.1} parent=1 // pred_check_branch
      %79 = sbr.rel (0) target = $region33
    $region32: #{bfgnn_forward.1} parent=1 // pred_region
      _
    $region33: #{bfgnn_forward.1} parent=1 // pred_fallthru
      _
    // Predicated region
    $region34: #{bfgnn_forward.1} parent=1 // pred_check
      _
    $region35: #{bfgnn_forward.1} parent=1 // pred_check_branch
      %81 = sbr.rel (0) target = $region37
    $region36: #{bfgnn_forward.1} parent=1 // pred_region
      _
    $region37: #{bfgnn_forward.1} parent=1 // pred_fallthru
      _
    // Predicated region
    $region38: #{bfgnn_forward.1} parent=1 // pred_check
      _
    $region39: #{bfgnn_forward.1} parent=1 // pred_check_branch
      %83 = sbr.rel (0) target = $region41
    $region40: #{bfgnn_forward.1} parent=1 // pred_region
      _
    $region41: #{bfgnn_forward.1} parent=1 // pred_fallthru
      _
    // Predicated region
    $region42: #{bfgnn_forward.1} parent=1 // pred_check
      _
    $region43: #{bfgnn_forward.1} parent=1 // pred_check_branch
      %85 = sbr.rel (0) target = $region45
    $region44: #{bfgnn_forward.1} parent=1 // pred_region
      %87 = vsyncadd [#allocation9], 0
      %s88 = sshll.u32 %s10, 4
      %s89 = int_to_ptr.hbm [resolvable:$true] %s88
      %s90 = sshll.u32 [#allocation8], 4
      %s91 = int_to_ptr.vmem [resolvable:$true] %s90
      %96 = dma.hbm_to_vmem [thread:$0]  %s89, 2048, %s91, [#allocation9], 64, 64, 4
    $region45: #{bfgnn_forward.1} parent=1 // pred_fallthru
      _
    // Predicated region
    $region46: #{bfgnn_forward.1} parent=1 // pred_check
      _
    $region47: #{bfgnn_forward.1} parent=1 // pred_check_branch
      %98 = sbr.rel (0) target = $region49
    $region48: #{bfgnn_forward.1} parent=1 // pred_region
      _
    $region49: #{bfgnn_forward.1} parent=1 // pred_fallthru
      _
    // Predicated region
    $region50: #{bfgnn_forward.1} parent=1 // pred_check
      _
    $region51: #{bfgnn_forward.1} parent=1 // pred_check_branch
      %100 = sbr.rel (0) target = $region53
    $region52: #{bfgnn_forward.1} parent=1 // pred_region
      %102 = vsyncadd [#allocation9], 0
      %s103 = sshll.u32 %s12, 4
      %s104 = int_to_ptr.hbm [resolvable:$true] %s103
      %s105 = sshll.u32 [#allocation10], 4
      %s106 = int_to_ptr.vmem [resolvable:$true] %s105
      %111 = dma.hbm_to_vmem [thread:$0]  %s104, 1024, %s106, [#allocation9], 64, 64, 4
    $region53: #{bfgnn_forward.1} parent=1 // pred_fallthru
      _
    // Predicated region
    $region54: #{bfgnn_forward.1} parent=1 // pred_check
      _
    $region55: #{bfgnn_forward.1} parent=1 // pred_check_branch
      %113 = sbr.rel (0) target = $region57
    $region56: #{bfgnn_forward.1} parent=1 // pred_region
      _
    $region57: #{bfgnn_forward.1} parent=1 // pred_fallthru
      _
    // Predicated region
    $region58: #{bfgnn_forward.1} parent=1 // pred_check
      _
    $region59: #{bfgnn_forward.1} parent=1 // pred_check_branch
      %115 = sbr.rel (0) target = $region61
    $region60: #{bfgnn_forward.1} parent=1 // pred_region
      %117 = vsyncadd [#allocation12], 0
      %s118 = sshll.u32 %s14, 4
      %s119 = int_to_ptr.hbm [resolvable:$true] %s118
      %s120 = sshll.u32 [#allocation11], 4
      %s121 = int_to_ptr.vmem [resolvable:$true] %s120
      %126 = dma.hbm_to_vmem [thread:$0]  %s119, 1024, %s121, [#allocation12], 64, 64, 4
    $region61: #{bfgnn_forward.1} parent=1 // pred_fallthru
      _
    // Predicated region
    $region62: #{bfgnn_forward.1} parent=1 // pred_check
      _
    $region63: #{bfgnn_forward.1} parent=1 // pred_check_branch
      %128 = sbr.rel (0) target = $region65
    $region64: #{bfgnn_forward.1} parent=1 // pred_region
      _
    $region65: #{bfgnn_forward.1} parent=1 // pred_fallthru
      _
    // Predicated region
    $region66: #{bfgnn_forward.1} parent=1 // pred_check
      _
    $region67: #{bfgnn_forward.1} parent=1 // pred_check_branch
      %130 = sbr.rel (0) target = $region69
    $region68: #{bfgnn_forward.1} parent=1 // pred_region
      %132 = vsyncadd [#allocation12], 0
      %s133 = sshll.u32 %s16, 4
      %s134 = int_to_ptr.hbm [resolvable:$true] %s133
      %s135 = sshll.u32 [#allocation13], 4
      %s136 = int_to_ptr.vmem [resolvable:$true] %s135
      %141 = dma.hbm_to_vmem [thread:$0]  %s134, 1024, %s136, [#allocation12], 64, 64, 4
    $region69: #{bfgnn_forward.1} parent=1 // pred_fallthru
      _
    // Predicated region
    $region70: #{bfgnn_forward.1} parent=1 // pred_check
      _
    $region71: #{bfgnn_forward.1} parent=1 // pred_check_branch
      %143 = sbr.rel (0) target = $region73
    $region72: #{bfgnn_forward.1} parent=1 // pred_region
      %145 = vsyncadd [#allocation15], 0
      %s146 = sshll.u32 %s17, 4
      %s147 = int_to_ptr.hbm [resolvable:$true] %s146
      %s148 = sshll.u32 [#allocation14], 4
      %s149 = int_to_ptr.vmem [resolvable:$true] %s148
      %154 = dma.hbm_to_vmem [thread:$0]  %s147, 8192, %s149, [#allocation15], 64, 64, 4
    $region73: #{bfgnn_forward.1} parent=1 // pred_fallthru
      _
    // Predicated region
    $region74: #{bfgnn_forward.1} parent=1 // pred_check
      _
    $region75: #{bfgnn_forward.1} parent=1 // pred_check_branch
      %156 = sbr.rel (0) target = $region77
    $region76: #{bfgnn_forward.1} parent=1 // pred_region
      %158 = vsyncadd [#allocation15], 0
      %s159 = sshll.u32 %s18, 4
      %s160 = int_to_ptr.hbm [resolvable:$true] %s159
      %s161 = sshll.u32 [#allocation16], 4
      %s162 = int_to_ptr.vmem [resolvable:$true] %s161
      %167 = dma.hbm_to_vmem [thread:$0]  %s160, 2048, %s162, [#allocation15], 64, 64, 4
    $region77: #{bfgnn_forward.1} parent=1 // pred_fallthru
      _
    // Predicated region
    $region78: #{bfgnn_forward.1} parent=1 // pred_check
      _
    $region79: #{bfgnn_forward.1} parent=1 // pred_check_branch
      %169 = sbr.rel (0) target = $region81
    $region80: #{bfgnn_forward.1} parent=1 // pred_region
      _
    $region81: #{bfgnn_forward.1} parent=1 // pred_fallthru
      _
    // Predicated region
    $region82: #{bfgnn_forward.1} parent=1 // pred_check
      _
    $region83: #{bfgnn_forward.1} parent=1 // pred_check_branch
      %171 = sbr.rel (0) target = $region85
    $region84: #{bfgnn_forward.1} parent=1 // pred_region
      _
    $region85: #{bfgnn_forward.1} parent=1 // pred_fallthru
      _
    // Predicated region
    $region86: #{bfgnn_forward.1} parent=1 // pred_check
      _
    $region87: #{bfgnn_forward.1} parent=1 // pred_check_branch
      %173 = sbr.rel (0) target = $region89
    $region88: #{bfgnn_forward.1} parent=1 // pred_region
      _
    $region89: #{bfgnn_forward.1} parent=1 // pred_fallthru
      _
    // Predicated region
    $region90: #{bfgnn_forward.1} parent=1 // pred_check
      _
    $region91: #{bfgnn_forward.1} parent=1 // pred_check_branch
      %175 = sbr.rel (0) target = $region93
    $region92: #{bfgnn_forward.1} parent=1 // pred_region
      %177 = dma.done [#allocation3], 128
    $region93: #{bfgnn_forward.1} parent=1 // pred_fallthru
      _
    // Predicated region
    $region94: #{bfgnn_forward.1} parent=1 // pred_check
      _
    $region95: #{bfgnn_forward.1} parent=1 // pred_check_branch
      %179 = sbr.rel (0) target = $region97
    $region96: #{bfgnn_forward.1} parent=1 // pred_region
      %181 = dma.done [#allocation6], 128
    $region97: #{bfgnn_forward.1} parent=1 // pred_fallthru
      _
    // Predicated region
    $region98: #{bfgnn_forward.1} parent=1 // pred_check
      _
    $region99: #{bfgnn_forward.1} parent=1 // pred_check_branch
      %183 = sbr.rel (0) target = $region101
    $region100: #{bfgnn_forward.1} parent=1 // pred_region
      %185 = dma.done [#allocation6], 1024
    $region101: #{bfgnn_forward.1} parent=1 // pred_fallthru
      _
    // Predicated region
    $region102: #{bfgnn_forward.1} parent=1 // pred_check
      _
    $region103: #{bfgnn_forward.1} parent=1 // pred_check_branch
      %187 = sbr.rel (0) target = $region105
    $region104: #{bfgnn_forward.1} parent=1 // pred_region
      %189 = dma.done [#allocation9], 2048
    $region105: #{bfgnn_forward.1} parent=1 // pred_fallthru
      _
    // Predicated region
    $region106: #{bfgnn_forward.1} parent=1 // pred_check
      _
    $region107: #{bfgnn_forward.1} parent=1 // pred_check_branch
      %191 = sbr.rel (0) target = $region109
    $region108: #{bfgnn_forward.1} parent=1 // pred_region
      %193 = dma.done [#allocation9], 1024
    $region109: #{bfgnn_forward.1} parent=1 // pred_fallthru
      _
    // Predicated region
    $region110: #{bfgnn_forward.1} parent=1 // pred_check
      _
    $region111: #{bfgnn_forward.1} parent=1 // pred_check_branch
      %195 = sbr.rel (0) target = $region113
    $region112: #{bfgnn_forward.1} parent=1 // pred_region
      %197 = dma.done [#allocation12], 1024
    $region113: #{bfgnn_forward.1} parent=1 // pred_fallthru
      _
    // Predicated region
    $region114: #{bfgnn_forward.1} parent=1 // pred_check
      _
    $region115: #{bfgnn_forward.1} parent=1 // pred_check_branch
      %199 = sbr.rel (0) target = $region117
    $region116: #{bfgnn_forward.1} parent=1 // pred_region
      %201 = dma.done [#allocation12], 1024
    $region117: #{bfgnn_forward.1} parent=1 // pred_fallthru
      _
    // Predicated region
    $region118: #{bfgnn_forward.1} parent=1 // pred_check
      _
    $region119: #{bfgnn_forward.1} parent=1 // pred_check_branch
      %203 = sbr.rel (0) target = $region121
    $region120: #{bfgnn_forward.1} parent=1 // pred_region
      %205 = dma.done [#allocation15], 8192
    $region121: #{bfgnn_forward.1} parent=1 // pred_fallthru
      _
    // Predicated region
    $region122: #{bfgnn_forward.1} parent=1 // pred_check
      _
    $region123: #{bfgnn_forward.1} parent=1 // pred_check_branch
      %207 = sbr.rel (0) target = $region125
    $region124: #{bfgnn_forward.1} parent=1 // pred_region
      %209 = dma.done [#allocation15], 2048
    $region125: #{bfgnn_forward.1} parent=1 // pred_fallthru
      _
    %v211 = vld [vmem:[%s2] sm:$0xf]
    %v212 = vld [vmem:[%s2 + $0x4] sm:$0xf]
    %v213 = vld [vmem:[%s3] sm:$0xf]
    %v214 = vld [vmem:[#allocation2] sm:$0xf]
    %v215 = vld [vmem:[#allocation2 + $0x4] sm:$0xf]
    %v216 = vld [vmem:[%s0] sm:$0xf]
    %v217 = vld [vmem:[%s0 + $0x4] sm:$0xf]
    %v218 = vld [vmem:[#allocation7] sm:$0xf]
    %v219 = vld [vmem:[#allocation7 + $0x4] sm:$0xf]
    %v220 = vld [vmem:[#allocation7 + $0x8] sm:$0xf]
    %v221 = vld [vmem:[#allocation7 + $0xc] sm:$0xf]
    %v222 = vld [vmem:[#allocation7 + $0x10] sm:$0xf]
    %v223 = vld [vmem:[#allocation7 + $0x14] sm:$0xf]
    %v224 = vld [vmem:[#allocation7 + $0x18] sm:$0xf]
    %v225 = vld [vmem:[#allocation7 + $0x1c] sm:$0xf]
    %v226 = vld [vmem:[#allocation7 + $0x20] sm:$0xf]
    %v227 = vld [vmem:[#allocation7 + $0x24] sm:$0xf]
    %v228 = vld [vmem:[#allocation7 + $0x28] sm:$0xf]
    %v229 = vld [vmem:[#allocation7 + $0x2c] sm:$0xf]
    %v230 = vld [vmem:[#allocation7 + $0x30] sm:$0xf]
    %v231 = vld [vmem:[#allocation7 + $0x34] sm:$0xf]
    %v232 = vld [vmem:[#allocation7 + $0x38] sm:$0xf]
    %v233 = vld [vmem:[#allocation7 + $0x3c] sm:$0xf]
    %v234 = vld [vmem:[%s7] sm:$0x1]
    %v236 = vperm.slane %v234, 0
    %v240 = vunpack.c.l.b16 %v216
    %v241 = vunpack.c.l.b16 %v217
    %v242 = vpack.c.b16 %v241, %v240
    %v260 = vunpack.c.l.b16 %v218
    %v261 = vunpack.c.l.b16 %v219
    %v262 = vunpack.c.l.b16 %v220
    %v263 = vunpack.c.l.b16 %v221
    %v264 = vunpack.c.l.b16 %v222
    %v265 = vunpack.c.l.b16 %v223
    %v266 = vunpack.c.l.b16 %v224
    %v267 = vunpack.c.l.b16 %v225
    %v268 = vunpack.c.l.b16 %v226
    %v269 = vunpack.c.l.b16 %v227
    %v270 = vunpack.c.l.b16 %v228
    %v271 = vunpack.c.l.b16 %v229
    %v272 = vunpack.c.l.b16 %v230
    %v273 = vunpack.c.l.b16 %v231
    %v274 = vunpack.c.l.b16 %v232
    %v275 = vunpack.c.l.b16 %v233
    %v276 = vpack.c.b16 %v261, %v260
    %v277 = vpack.c.b16 %v263, %v262
    %v278 = vpack.c.b16 %v265, %v264
    %v279 = vpack.c.b16 %v267, %v266
    %v280 = vpack.c.b16 %v269, %v268
    %v281 = vpack.c.b16 %v271, %v270
    %v282 = vpack.c.b16 %v273, %v272
    %v283 = vpack.c.b16 %v275, %v274
    %292 = vmatpush.bf16.msra.mxu0 %v283
    %293 = vmatpush.bf16.msra.mxu0 %v282
    %294 = vmatpush.bf16.msra.mxu0 %v281
    %295 = vmatpush.bf16.msra.mxu0 %v280
    %296 = vmatpush.bf16.msra.mxu0 %v279
    %297 = vmatpush.bf16.msra.mxu0 %v278
    %298 = vmatpush.bf16.msra.mxu0 %v277
    %299 = vmatpush.bf16.msra.mxu0 %v276
    %300 = vmatmul.bf16.gmra.mxu0 %v242
    %v301 = vpop.f32.mrf.mxu0
    %v302 = vadd.f32 %v236, %v301
    %v303 = vpop.f32.mrf.mxu0
    %v304 = vadd.f32 %v236, %v303
    %305 = vdwg.mxu0
    %v308 = vunpack.c.l.b16 %v211
    %v309 = vunpack.c.l.b16 %v212
    %v310 = vpack.c.b16 %v309, %v308
    %vm311 = vcmask 64512
    %v313 = vsel %vm311, %v310, 0
    %vm315 = vcmask 1043456
    %v317 = vsel %vm315, 0, 0
    %319 = vmatpush.bf16.msra.mxu0 0
    %320 = vmatpush.bf16.msra.mxu0 0
    %321 = vmatpush.bf16.msra.mxu0 0
    %322 = vmatpush.bf16.msra.mxu0 0
    %323 = vmatpush.bf16.msra.mxu0 0
    %324 = vmatpush.bf16.msra.mxu0 0
    %325 = vmatpush.bf16.msra.mxu0 0
    %326 = vmatpush.bf16.msra.mxu0 %v317
    %327 = vmatmul.bf16.gmra.mxu0 %v313
    %v328 = vpop.f32.mrf.mxu0
    %v329 = vadd.f32 0.0, %v328
    %v330 = vpop.f32.mrf.mxu0
    %v331 = vadd.f32 0.0, %v330
    %332 = vdwg.mxu0
    %v333 = vadd.f32 %v302, %v329
    %v334 = vadd.f32 %v304, %v331
    %v335 = vpack.c.bf16 %v334, %v333
    %v338 = vunpack.c.l.b16 %v214
    %v339 = vunpack.c.l.b16 %v215
    %v340 = vpack.c.b16 %v339, %v338
    %vm341 = vcmask 130048
    %v343 = vsel %vm341, %v340, 0
    %345 = vmatpush.bf16.msra.mxu0 0
    %346 = vmatpush.bf16.msra.mxu0 0
    %347 = vmatpush.bf16.msra.mxu0 0
    %348 = vmatpush.bf16.msra.mxu0 0
    %349 = vmatpush.bf16.msra.mxu0 0
    %350 = vmatpush.bf16.msra.mxu0 0
    %351 = vmatpush.bf16.msra.mxu0 0
    %352 = vmatpush.bf16.msra.mxu0 %v335
    %353 = vmatmul.bf16.gmra.mxu0 %v343
    %v354 = vpop.f32.mrf.mxu0
    %v355 = vadd.f32 0.0, %v354
    %v356 = vpop.f32.mrf.mxu0
    %v357 = vadd.f32 0.0, %v356
    %358 = vdwg.mxu0
    %v359 = vadd.f32 %v333, %v355
    %v360 = vadd.f32 %v334, %v357
    %v361 = vpack.c.bf16 %v360, %v359
    %v362 = vld [vmem:[%s8] sm:$0xf]
    %v363 = vld [vmem:[%s8 + $0x4] sm:$0xf]
    %v364 = vld [vmem:[%s8 + $0x8] sm:$0xf]
    %v365 = vld [vmem:[%s8 + $0xc] sm:$0xf]
    %v366 = vld [vmem:[%s8 + $0x10] sm:$0xf]
    %v367 = vld [vmem:[%s8 + $0x14] sm:$0xf]
    %v368 = vld [vmem:[%s8 + $0x18] sm:$0xf]
    %v369 = vld [vmem:[%s8 + $0x1c] sm:$0xf]
    %v370 = vld [vmem:[%s8 + $0x20] sm:$0xf]
    %v371 = vld [vmem:[%s8 + $0x24] sm:$0xf]
    %v372 = vld [vmem:[%s8 + $0x28] sm:$0xf]
    %v373 = vld [vmem:[%s8 + $0x2c] sm:$0xf]
    %v374 = vld [vmem:[%s8 + $0x30] sm:$0xf]
    %v375 = vld [vmem:[%s8 + $0x34] sm:$0xf]
    %v376 = vld [vmem:[%s8 + $0x38] sm:$0xf]
    %v377 = vld [vmem:[%s8 + $0x3c] sm:$0xf]
    %v378 = vld [vmem:[%s9] sm:$0x1]
    %v380 = vperm.slane %v378, 0
    %v398 = vunpack.c.l.b16 %v362
    %v399 = vunpack.c.l.b16 %v363
    %v400 = vunpack.c.l.b16 %v364
    %v401 = vunpack.c.l.b16 %v365
    %v402 = vunpack.c.l.b16 %v366
    %v403 = vunpack.c.l.b16 %v367
    %v404 = vunpack.c.l.b16 %v368
    %v405 = vunpack.c.l.b16 %v369
    %v406 = vunpack.c.l.b16 %v370
    %v407 = vunpack.c.l.b16 %v371
    %v408 = vunpack.c.l.b16 %v372
    %v409 = vunpack.c.l.b16 %v373
    %v410 = vunpack.c.l.b16 %v374
    %v411 = vunpack.c.l.b16 %v375
    %v412 = vunpack.c.l.b16 %v376
    %v413 = vunpack.c.l.b16 %v377
    %v414 = vpack.c.b16 %v399, %v398
    %v415 = vpack.c.b16 %v401, %v400
    %v416 = vpack.c.b16 %v403, %v402
    %v417 = vpack.c.b16 %v405, %v404
    %v418 = vpack.c.b16 %v407, %v406
    %v419 = vpack.c.b16 %v409, %v408
    %v420 = vpack.c.b16 %v411, %v410
    %v421 = vpack.c.b16 %v413, %v412
    %430 = vmatpush.bf16.msra.mxu0 %v421
    %431 = vmatpush.bf16.msra.mxu0 %v420
    %432 = vmatpush.bf16.msra.mxu0 %v419
    %433 = vmatpush.bf16.msra.mxu0 %v418
    %434 = vmatpush.bf16.msra.mxu0 %v417
    %435 = vmatpush.bf16.msra.mxu0 %v416
    %436 = vmatpush.bf16.msra.mxu0 %v415
    %437 = vmatpush.bf16.msra.mxu0 %v414
    %438 = vmatmul.bf16.gmra.mxu0 %v361
    %v439 = vpop.f32.mrf.mxu0
    %v440 = vadd.f32 %v380, %v439
    %v441 = vpop.f32.mrf.mxu0
    %v442 = vadd.f32 %v380, %v441
    %443 = vdwg.mxu0
    %v444 = vmax.f32 %v440, 0.0
    %v445 = vmax.f32 %v442, 0.0
    %v446 = vpack.c.bf16 %v445, %v444
    %v447 = vld [vmem:[#allocation8] sm:$0xf]
    %v448 = vld [vmem:[#allocation8 + $0x4] sm:$0xf]
    %v449 = vld [vmem:[#allocation8 + $0x8] sm:$0xf]
    %v450 = vld [vmem:[#allocation8 + $0xc] sm:$0xf]
    %v451 = vld [vmem:[#allocation8 + $0x10] sm:$0xf]
    %v452 = vld [vmem:[#allocation8 + $0x14] sm:$0xf]
    %v453 = vld [vmem:[#allocation8 + $0x18] sm:$0xf]
    %v454 = vld [vmem:[#allocation8 + $0x1c] sm:$0xf]
    %v455 = vld [vmem:[#allocation8 + $0x20] sm:$0xf]
    %v456 = vld [vmem:[#allocation8 + $0x24] sm:$0xf]
    %v457 = vld [vmem:[#allocation8 + $0x28] sm:$0xf]
    %v458 = vld [vmem:[#allocation8 + $0x2c] sm:$0xf]
    %v459 = vld [vmem:[#allocation8 + $0x30] sm:$0xf]
    %v460 = vld [vmem:[#allocation8 + $0x34] sm:$0xf]
    %v461 = vld [vmem:[#allocation8 + $0x38] sm:$0xf]
    %v462 = vld [vmem:[#allocation8 + $0x3c] sm:$0xf]
    %v463 = vld [vmem:[%s11] sm:$0x1]
    %v465 = vperm.slane %v463, 0
    %v483 = vunpack.c.l.b16 %v447
    %v484 = vunpack.c.l.b16 %v448
    %v485 = vunpack.c.l.b16 %v449
    %v486 = vunpack.c.l.b16 %v450
    %v487 = vunpack.c.l.b16 %v451
    %v488 = vunpack.c.l.b16 %v452
    %v489 = vunpack.c.l.b16 %v453
    %v490 = vunpack.c.l.b16 %v454
    %v491 = vunpack.c.l.b16 %v455
    %v492 = vunpack.c.l.b16 %v456
    %v493 = vunpack.c.l.b16 %v457
    %v494 = vunpack.c.l.b16 %v458
    %v495 = vunpack.c.l.b16 %v459
    %v496 = vunpack.c.l.b16 %v460
    %v497 = vunpack.c.l.b16 %v461
    %v498 = vunpack.c.l.b16 %v462
    %v499 = vpack.c.b16 %v484, %v483
    %v500 = vpack.c.b16 %v486, %v485
    %v501 = vpack.c.b16 %v488, %v487
    %v502 = vpack.c.b16 %v490, %v489
    %v503 = vpack.c.b16 %v492, %v491
    %v504 = vpack.c.b16 %v494, %v493
    %v505 = vpack.c.b16 %v496, %v495
    %v506 = vpack.c.b16 %v498, %v497
    %515 = vmatpush.bf16.msra.mxu0 %v506
    %516 = vmatpush.bf16.msra.mxu0 %v505
    %517 = vmatpush.bf16.msra.mxu0 %v504
    %518 = vmatpush.bf16.msra.mxu0 %v503
    %519 = vmatpush.bf16.msra.mxu0 %v502
    %520 = vmatpush.bf16.msra.mxu0 %v501
    %521 = vmatpush.bf16.msra.mxu0 %v500
    %522 = vmatpush.bf16.msra.mxu0 %v499
    %523 = vmatmul.bf16.gmra.mxu0 %v446
    %v524 = vpop.f32.mrf.mxu0
    %v525 = vadd.f32 %v465, %v524
    %v526 = vpop.f32.mrf.mxu0
    %v527 = vadd.f32 %v465, %v526
    %528 = vdwg.mxu0
    %v529 = vmax.f32 %v525, 0.0
    %v530 = vmax.f32 %v527, 0.0
    %v531 = vadd.f32 %v529, %v333
    %v532 = vadd.f32 %v530, %v334
    %v534 = vsel %vm341, %v213, 0
    %536 = vmatpush.bf16.msra.mxu0 0
    %537 = vmatpush.bf16.msra.mxu0 0
    %538 = vmatpush.bf16.msra.mxu0 0
    %539 = vmatpush.bf16.msra.mxu0 0
    %540 = vmatpush.bf16.msra.mxu0 0
    %541 = vmatpush.bf16.msra.mxu0 0
    %542 = vmatpush.bf16.msra.mxu0 0
    %543 = vmatpush.bf16.msra.mxu0 %v335
    %544 = vmatmul.bf16.gmra.mxu0 %v534
    %v545 = vpop.f32.mrf.mxu0
    %v546 = vadd.f32 0.0, %v545
    %v547 = vpop.f32.mrf.mxu0
    %548 = vdwg.mxu0
    %v549 = vpack.c.bf16 %v546, %v546
    %v550 = vld [vmem:[#allocation10] sm:$0xf]
    %v551 = vld [vmem:[#allocation10 + $0x4] sm:$0xf]
    %v552 = vld [vmem:[#allocation10 + $0x8] sm:$0xf]
    %v553 = vld [vmem:[#allocation10 + $0xc] sm:$0xf]
    %v554 = vld [vmem:[#allocation10 + $0x10] sm:$0xf]
    %v555 = vld [vmem:[#allocation10 + $0x14] sm:$0xf]
    %v556 = vld [vmem:[#allocation10 + $0x18] sm:$0xf]
    %v557 = vld [vmem:[#allocation10 + $0x1c] sm:$0xf]
    %v558 = vld [vmem:[#allocation10 + $0x20] sm:$0xf]
    %v559 = vld [vmem:[#allocation10 + $0x24] sm:$0xf]
    %v560 = vld [vmem:[#allocation10 + $0x28] sm:$0xf]
    %v561 = vld [vmem:[#allocation10 + $0x2c] sm:$0xf]
    %v562 = vld [vmem:[#allocation10 + $0x30] sm:$0xf]
    %v563 = vld [vmem:[#allocation10 + $0x34] sm:$0xf]
    %v564 = vld [vmem:[#allocation10 + $0x38] sm:$0xf]
    %v565 = vld [vmem:[#allocation10 + $0x3c] sm:$0xf]
    %v566 = vld [vmem:[%s13] sm:$0x1]
    %v568 = vperm.slane %v566, 0
    %v586 = vunpack.c.l.b16 %v550
    %v587 = vunpack.c.l.b16 %v551
    %v588 = vunpack.c.l.b16 %v552
    %v589 = vunpack.c.l.b16 %v553
    %v590 = vunpack.c.l.b16 %v554
    %v591 = vunpack.c.l.b16 %v555
    %v592 = vunpack.c.l.b16 %v556
    %v593 = vunpack.c.l.b16 %v557
    %v594 = vunpack.c.l.b16 %v558
    %v595 = vunpack.c.l.b16 %v559
    %v596 = vunpack.c.l.b16 %v560
    %v597 = vunpack.c.l.b16 %v561
    %v598 = vunpack.c.l.b16 %v562
    %v599 = vunpack.c.l.b16 %v563
    %v600 = vunpack.c.l.b16 %v564
    %v601 = vunpack.c.l.b16 %v565
    %v602 = vpack.c.b16 %v587, %v586
    %v603 = vpack.c.b16 %v589, %v588
    %v604 = vpack.c.b16 %v591, %v590
    %v605 = vpack.c.b16 %v593, %v592
    %v606 = vpack.c.b16 %v595, %v594
    %v607 = vpack.c.b16 %v597, %v596
    %v608 = vpack.c.b16 %v599, %v598
    %v609 = vpack.c.b16 %v601, %v600
    %618 = vmatpush.bf16.msra.mxu0 %v609
    %619 = vmatpush.bf16.msra.mxu0 %v608
    %620 = vmatpush.bf16.msra.mxu0 %v607
    %621 = vmatpush.bf16.msra.mxu0 %v606
    %622 = vmatpush.bf16.msra.mxu0 %v605
    %623 = vmatpush.bf16.msra.mxu0 %v604
    %624 = vmatpush.bf16.msra.mxu0 %v603
    %625 = vmatpush.bf16.msra.mxu0 %v602
    %626 = vmatmul.bf16.gmra.mxu0 %v549
    %v627 = vpop.f32.mrf.mxu0
    %v628 = vadd.f32 %v568, %v627
    %v629 = vpop.f32.mrf.mxu0
    %630 = vdwg.mxu0
    %v631 = vmax.f32 %v628, 0.0
    %v632 = vpack.c.bf16 %v631, %v631
    %v633 = vld [vmem:[#allocation11] sm:$0xf]
    %v634 = vld [vmem:[#allocation11 + $0x4] sm:$0xf]
    %v635 = vld [vmem:[#allocation11 + $0x8] sm:$0xf]
    %v636 = vld [vmem:[#allocation11 + $0xc] sm:$0xf]
    %v637 = vld [vmem:[#allocation11 + $0x10] sm:$0xf]
    %v638 = vld [vmem:[#allocation11 + $0x14] sm:$0xf]
    %v639 = vld [vmem:[#allocation11 + $0x18] sm:$0xf]
    %v640 = vld [vmem:[#allocation11 + $0x1c] sm:$0xf]
    %v641 = vld [vmem:[#allocation11 + $0x20] sm:$0xf]
    %v642 = vld [vmem:[#allocation11 + $0x24] sm:$0xf]
    %v643 = vld [vmem:[#allocation11 + $0x28] sm:$0xf]
    %v644 = vld [vmem:[#allocation11 + $0x2c] sm:$0xf]
    %v645 = vld [vmem:[#allocation11 + $0x30] sm:$0xf]
    %v646 = vld [vmem:[#allocation11 + $0x34] sm:$0xf]
    %v647 = vld [vmem:[#allocation11 + $0x38] sm:$0xf]
    %v648 = vld [vmem:[#allocation11 + $0x3c] sm:$0xf]
    %v649 = vld [vmem:[%s15] sm:$0x1]
    %v651 = vperm.slane %v649, 0
    %v669 = vunpack.c.l.b16 %v633
    %v670 = vunpack.c.l.b16 %v634
    %v671 = vunpack.c.l.b16 %v635
    %v672 = vunpack.c.l.b16 %v636
    %v673 = vunpack.c.l.b16 %v637
    %v674 = vunpack.c.l.b16 %v638
    %v675 = vunpack.c.l.b16 %v639
    %v676 = vunpack.c.l.b16 %v640
    %v677 = vunpack.c.l.b16 %v641
    %v678 = vunpack.c.l.b16 %v642
    %v679 = vunpack.c.l.b16 %v643
    %v680 = vunpack.c.l.b16 %v644
    %v681 = vunpack.c.l.b16 %v645
    %v682 = vunpack.c.l.b16 %v646
    %v683 = vunpack.c.l.b16 %v647
    %v684 = vunpack.c.l.b16 %v648
    %v685 = vpack.c.b16 %v670, %v669
    %v686 = vpack.c.b16 %v672, %v671
    %v687 = vpack.c.b16 %v674, %v673
    %v688 = vpack.c.b16 %v676, %v675
    %v689 = vpack.c.b16 %v678, %v677
    %v690 = vpack.c.b16 %v680, %v679
    %v691 = vpack.c.b16 %v682, %v681
    %v692 = vpack.c.b16 %v684, %v683
    %701 = vmatpush.bf16.msra.mxu0 %v692
    %702 = vmatpush.bf16.msra.mxu0 %v691
    %703 = vmatpush.bf16.msra.mxu0 %v690
    %704 = vmatpush.bf16.msra.mxu0 %v689
    %705 = vmatpush.bf16.msra.mxu0 %v688
    %706 = vmatpush.bf16.msra.mxu0 %v687
    %707 = vmatpush.bf16.msra.mxu0 %v686
    %708 = vmatpush.bf16.msra.mxu0 %v685
    %709 = vmatmul.bf16.gmra.mxu0 %v632
    %v710 = vpop.f32.mrf.mxu0
    %v711 = vadd.f32 %v651, %v710
    %v712 = vpop.f32.mrf.mxu0
    %713 = vdwg.mxu0
    %v714 = vmax.f32 %v711, 0.0
    %v715 = vpack.c.bf16 %v714, %v714
    %v717 = vsel %vm315, %v715, 0
    %719 = vmatpush.bf16.msra.mxu0 0
    %720 = vmatpush.bf16.msra.mxu0 0
    %721 = vmatpush.bf16.msra.mxu0 0
    %722 = vmatpush.bf16.msra.mxu0 0
    %723 = vmatpush.bf16.msra.mxu0 0
    %724 = vmatpush.bf16.msra.mxu0 0
    %725 = vmatpush.bf16.msra.mxu0 0
    %726 = vmatpush.bf16.msra.mxu0 %v717
    %727 = vmatmul.bf16.gmra.mxu0 %v313
    %v728 = vpop.f32.mrf.mxu0
    %v729 = vadd.f32 0.0, %v728
    %v730 = vpop.f32.mrf.mxu0
    %v731 = vadd.f32 0.0, %v730
    %732 = vdwg.mxu0
    %v733 = vadd.f32 %v531, %v729
    %v734 = vadd.f32 %v532, %v731
    %v735 = vpack.c.bf16 %v734, %v733
    %736 = vmatpush.bf16.msra.mxu0 0
    %737 = vmatpush.bf16.msra.mxu0 0
    %738 = vmatpush.bf16.msra.mxu0 0
    %739 = vmatpush.bf16.msra.mxu0 0
    %740 = vmatpush.bf16.msra.mxu0 0
    %741 = vmatpush.bf16.msra.mxu0 0
    %742 = vmatpush.bf16.msra.mxu0 0
    %743 = vmatpush.bf16.msra.mxu0 %v735
    %744 = vmatmul.bf16.gmra.mxu0 %v343
    %v745 = vpop.f32.mrf.mxu0
    %v746 = vadd.f32 0.0, %v745
    %v747 = vpop.f32.mrf.mxu0
    %v748 = vadd.f32 0.0, %v747
    %749 = vdwg.mxu0
    %v750 = vadd.f32 %v733, %v746
    %v751 = vadd.f32 %v734, %v748
    %v752 = vpack.c.bf16 %v751, %v750
    %s753 = scalar_lea.vmem %s8, 64
    %v754 = vld [vmem:[%s753] sm:$0xf]
    %v755 = vld [vmem:[%s753 + $0x4] sm:$0xf]
    %v756 = vld [vmem:[%s753 + $0x8] sm:$0xf]
    %v757 = vld [vmem:[%s753 + $0xc] sm:$0xf]
    %v758 = vld [vmem:[%s753 + $0x10] sm:$0xf]
    %v759 = vld [vmem:[%s753 + $0x14] sm:$0xf]
    %v760 = vld [vmem:[%s753 + $0x18] sm:$0xf]
    %v761 = vld [vmem:[%s753 + $0x1c] sm:$0xf]
    %v762 = vld [vmem:[%s753 + $0x20] sm:$0xf]
    %v763 = vld [vmem:[%s753 + $0x24] sm:$0xf]
    %v764 = vld [vmem:[%s753 + $0x28] sm:$0xf]
    %v765 = vld [vmem:[%s753 + $0x2c] sm:$0xf]
    %v766 = vld [vmem:[%s753 + $0x30] sm:$0xf]
    %v767 = vld [vmem:[%s753 + $0x34] sm:$0xf]
    %v768 = vld [vmem:[%s753 + $0x38] sm:$0xf]
    %v769 = vld [vmem:[%s753 + $0x3c] sm:$0xf]
    %s770 = scalar_lea.vmem %s9, 1
    %v771 = vld [vmem:[%s770] sm:$0x1]
    %v773 = vperm.slane %v771, 0
    %v791 = vunpack.c.l.b16 %v754
    %v792 = vunpack.c.l.b16 %v755
    %v793 = vunpack.c.l.b16 %v756
    %v794 = vunpack.c.l.b16 %v757
    %v795 = vunpack.c.l.b16 %v758
    %v796 = vunpack.c.l.b16 %v759
    %v797 = vunpack.c.l.b16 %v760
    %v798 = vunpack.c.l.b16 %v761
    %v799 = vunpack.c.l.b16 %v762
    %v800 = vunpack.c.l.b16 %v763
    %v801 = vunpack.c.l.b16 %v764
    %v802 = vunpack.c.l.b16 %v765
    %v803 = vunpack.c.l.b16 %v766
    %v804 = vunpack.c.l.b16 %v767
    %v805 = vunpack.c.l.b16 %v768
    %v806 = vunpack.c.l.b16 %v769
    %v807 = vpack.c.b16 %v792, %v791
    %v808 = vpack.c.b16 %v794, %v793
    %v809 = vpack.c.b16 %v796, %v795
    %v810 = vpack.c.b16 %v798, %v797
    %v811 = vpack.c.b16 %v800, %v799
    %v812 = vpack.c.b16 %v802, %v801
    %v813 = vpack.c.b16 %v804, %v803
    %v814 = vpack.c.b16 %v806, %v805
    %823 = vmatpush.bf16.msra.mxu0 %v814
    %824 = vmatpush.bf16.msra.mxu0 %v813
    %825 = vmatpush.bf16.msra.mxu0 %v812
    %826 = vmatpush.bf16.msra.mxu0 %v811
    %827 = vmatpush.bf16.msra.mxu0 %v810
    %828 = vmatpush.bf16.msra.mxu0 %v809
    %829 = vmatpush.bf16.msra.mxu0 %v808
    %830 = vmatpush.bf16.msra.mxu0 %v807
    %831 = vmatmul.bf16.gmra.mxu0 %v752
    %v832 = vpop.f32.mrf.mxu0
    %v833 = vadd.f32 %v773, %v832
    %v834 = vpop.f32.mrf.mxu0
    %v835 = vadd.f32 %v773, %v834
    %836 = vdwg.mxu0
    %v837 = vmax.f32 %v833, 0.0
    %v838 = vmax.f32 %v835, 0.0
    %v839 = vpack.c.bf16 %v838, %v837
    %s840 = scalar_lea.vmem [#allocation8], 64
    %v841 = vld [vmem:[%s840] sm:$0xf]
    %v842 = vld [vmem:[%s840 + $0x4] sm:$0xf]
    %v843 = vld [vmem:[%s840 + $0x8] sm:$0xf]
    %v844 = vld [vmem:[%s840 + $0xc] sm:$0xf]
    %v845 = vld [vmem:[%s840 + $0x10] sm:$0xf]
    %v846 = vld [vmem:[%s840 + $0x14] sm:$0xf]
    %v847 = vld [vmem:[%s840 + $0x18] sm:$0xf]
    %v848 = vld [vmem:[%s840 + $0x1c] sm:$0xf]
    %v849 = vld [vmem:[%s840 + $0x20] sm:$0xf]
    %v850 = vld [vmem:[%s840 + $0x24] sm:$0xf]
    %v851 = vld [vmem:[%s840 + $0x28] sm:$0xf]
    %v852 = vld [vmem:[%s840 + $0x2c] sm:$0xf]
    %v853 = vld [vmem:[%s840 + $0x30] sm:$0xf]
    %v854 = vld [vmem:[%s840 + $0x34] sm:$0xf]
    %v855 = vld [vmem:[%s840 + $0x38] sm:$0xf]
    %v856 = vld [vmem:[%s840 + $0x3c] sm:$0xf]
    %s857 = scalar_lea.vmem %s11, 1
    %v858 = vld [vmem:[%s857] sm:$0x1]
    %v860 = vperm.slane %v858, 0
    %v878 = vunpack.c.l.b16 %v841
    %v879 = vunpack.c.l.b16 %v842
    %v880 = vunpack.c.l.b16 %v843
    %v881 = vunpack.c.l.b16 %v844
    %v882 = vunpack.c.l.b16 %v845
    %v883 = vunpack.c.l.b16 %v846
    %v884 = vunpack.c.l.b16 %v847
    %v885 = vunpack.c.l.b16 %v848
    %v886 = vunpack.c.l.b16 %v849
    %v887 = vunpack.c.l.b16 %v850
    %v888 = vunpack.c.l.b16 %v851
    %v889 = vunpack.c.l.b16 %v852
    %v890 = vunpack.c.l.b16 %v853
    %v891 = vunpack.c.l.b16 %v854
    %v892 = vunpack.c.l.b16 %v855
    %v893 = vunpack.c.l.b16 %v856
    %v894 = vpack.c.b16 %v879, %v878
    %v895 = vpack.c.b16 %v881, %v880
    %v896 = vpack.c.b16 %v883, %v882
    %v897 = vpack.c.b16 %v885, %v884
    %v898 = vpack.c.b16 %v887, %v886
    %v899 = vpack.c.b16 %v889, %v888
    %v900 = vpack.c.b16 %v891, %v890
    %v901 = vpack.c.b16 %v893, %v892
    %910 = vmatpush.bf16.msra.mxu0 %v901
    %911 = vmatpush.bf16.msra.mxu0 %v900
    %912 = vmatpush.bf16.msra.mxu0 %v899
    %913 = vmatpush.bf16.msra.mxu0 %v898
    %914 = vmatpush.bf16.msra.mxu0 %v897
    %915 = vmatpush.bf16.msra.mxu0 %v896
    %916 = vmatpush.bf16.msra.mxu0 %v895
    %917 = vmatpush.bf16.msra.mxu0 %v894
    %918 = vmatmul.bf16.gmra.mxu0 %v839
    %v919 = vpop.f32.mrf.mxu0
    %v920 = vadd.f32 %v860, %v919
    %v921 = vpop.f32.mrf.mxu0
    %v922 = vadd.f32 %v860, %v921
    %923 = vdwg.mxu0
    %v924 = vadd.f32 %v920, %v733
    %v925 = vadd.f32 %v922, %v734
    %v926 = vunpack.c.l.bf16 %v211
    %v927 = vunpack.c.l.bf16 %v212
    %v928 = vsub.f32 1.0, %v926
    %v929 = vsub.f32 1.0, %v927
    %v930 = vmul.f32 %v928, 1e+30
    %v931 = vmul.f32 %v929, 1e+30
    %933 = vset.pattern.permute.xlu0 0
    %934 = vperm.xlu0 %933, %v930
    %v935 = vpop.permute.xlu0 %934
    %938 = vset.pattern.permute.xlu0 0
    %939 = vperm.xlu0 %938, %v931
    %v940 = vpop.permute.xlu0 %939
    %v942 = vsub.f32 %v924, %v935
    %v943 = vsub.f32 %v925, %v940
    %v944 = vmax.f32 %v942, %v943
    %v945 = vrot.slane %v944, 4
    %v946 = vmax.f32 %v944, %v945
    %v947 = vrot.slane %v946, 2
    %v948 = vmax.f32 %v946, %v947
    %v949 = vrot.slane %v948, 1
    %v950 = vmax.f32 %v948, %v949
    %951 = vset.pattern.permute.xlu0 1
    %952 = vperm.xlu0 %951, %v930
    %v953 = vpop.permute.xlu0 %952
    %955 = vset.pattern.permute.xlu0 1
    %956 = vperm.xlu0 %955, %v931
    %v957 = vpop.permute.xlu0 %956
    %v959 = vsub.f32 %v924, %v953
    %v960 = vsub.f32 %v925, %v957
    %v961 = vmax.f32 %v959, %v960
    %v962 = vrot.slane %v961, 4
    %v963 = vmax.f32 %v961, %v962
    %v964 = vrot.slane %v963, 2
    %v965 = vmax.f32 %v963, %v964
    %v966 = vrot.slane %v965, 1
    %v967 = vmax.f32 %v965, %v966
    %vm968 = vcmask 1040384
    %v969 = vsel %vm968, %v950, %v967
    %v970 = vpack.c.bf16 %v969, %v969
    %v971 = vld [vmem:[#allocation13] sm:$0xf]
    %v972 = vld [vmem:[#allocation13 + $0x4] sm:$0xf]
    %v973 = vld [vmem:[#allocation13 + $0x8] sm:$0xf]
    %v974 = vld [vmem:[#allocation13 + $0xc] sm:$0xf]
    %v975 = vld [vmem:[#allocation13 + $0x10] sm:$0xf]
    %v976 = vld [vmem:[#allocation13 + $0x14] sm:$0xf]
    %v977 = vld [vmem:[#allocation13 + $0x18] sm:$0xf]
    %v978 = vld [vmem:[#allocation13 + $0x1c] sm:$0xf]
    %v979 = vld [vmem:[#allocation13 + $0x20] sm:$0xf]
    %v980 = vld [vmem:[#allocation13 + $0x24] sm:$0xf]
    %v981 = vld [vmem:[#allocation13 + $0x28] sm:$0xf]
    %v982 = vld [vmem:[#allocation13 + $0x2c] sm:$0xf]
    %v983 = vld [vmem:[#allocation13 + $0x30] sm:$0xf]
    %v984 = vld [vmem:[#allocation13 + $0x34] sm:$0xf]
    %v985 = vld [vmem:[#allocation13 + $0x38] sm:$0xf]
    %v986 = vld [vmem:[#allocation13 + $0x3c] sm:$0xf]
    %v987 = vld [vmem:[#allocation5] sm:$0xff]
    %v988 = vld [vmem:[#allocation14] sm:$0xf]
    %v989 = vld [vmem:[#allocation14 + $0x4] sm:$0xf]
    %v990 = vld [vmem:[#allocation14 + $0x8] sm:$0xf]
    %v991 = vld [vmem:[#allocation14 + $0xc] sm:$0xf]
    %v992 = vld [vmem:[#allocation14 + $0x10] sm:$0xf]
    %v993 = vld [vmem:[#allocation14 + $0x14] sm:$0xf]
    %v994 = vld [vmem:[#allocation14 + $0x18] sm:$0xf]
    %v995 = vld [vmem:[#allocation14 + $0x1c] sm:$0xf]
    %v996 = vld [vmem:[#allocation14 + $0x20] sm:$0xf]
    %v997 = vld [vmem:[#allocation14 + $0x24] sm:$0xf]
    %v998 = vld [vmem:[#allocation14 + $0x28] sm:$0xf]
    %v999 = vld [vmem:[#allocation14 + $0x2c] sm:$0xf]
    %v1000 = vld [vmem:[#allocation14 + $0x30] sm:$0xf]
    %v1001 = vld [vmem:[#allocation14 + $0x34] sm:$0xf]
    %v1002 = vld [vmem:[#allocation14 + $0x38] sm:$0xf]
    %v1003 = vld [vmem:[#allocation14 + $0x3c] sm:$0xf]
    %v1004 = vld [vmem:[#allocation14 + $0x40] sm:$0xf]
    %v1005 = vld [vmem:[#allocation14 + $0x44] sm:$0xf]
    %v1006 = vld [vmem:[#allocation14 + $0x48] sm:$0xf]
    %v1007 = vld [vmem:[#allocation14 + $0x4c] sm:$0xf]
    %v1008 = vld [vmem:[#allocation14 + $0x50] sm:$0xf]
    %v1009 = vld [vmem:[#allocation14 + $0x54] sm:$0xf]
    %v1010 = vld [vmem:[#allocation14 + $0x58] sm:$0xf]
    %v1011 = vld [vmem:[#allocation14 + $0x5c] sm:$0xf]
    %v1012 = vld [vmem:[#allocation14 + $0x60] sm:$0xf]
    %v1013 = vld [vmem:[#allocation14 + $0x64] sm:$0xf]
    %v1014 = vld [vmem:[#allocation14 + $0x68] sm:$0xf]
    %v1015 = vld [vmem:[#allocation14 + $0x6c] sm:$0xf]
    %v1016 = vld [vmem:[#allocation14 + $0x70] sm:$0xf]
    %v1017 = vld [vmem:[#allocation14 + $0x74] sm:$0xf]
    %v1018 = vld [vmem:[#allocation14 + $0x78] sm:$0xf]
    %v1019 = vld [vmem:[#allocation14 + $0x7c] sm:$0xf]
    %v1020 = vld [vmem:[#allocation14 + $0x80] sm:$0xf]
    %v1021 = vld [vmem:[#allocation14 + $0x84] sm:$0xf]
    %v1022 = vld [vmem:[#allocation14 + $0x88] sm:$0xf]
    %v1023 = vld [vmem:[#allocation14 + $0x8c] sm:$0xf]
    %v1024 = vld [vmem:[#allocation14 + $0x90] sm:$0xf]
    %v1025 = vld [vmem:[#allocation14 + $0x94] sm:$0xf]
    %v1026 = vld [vmem:[#allocation14 + $0x98] sm:$0xf]
    %v1027 = vld [vmem:[#allocation14 + $0x9c] sm:$0xf]
    %v1028 = vld [vmem:[#allocation14 + $0xa0] sm:$0xf]
    %v1029 = vld [vmem:[#allocation14 + $0xa4] sm:$0xf]
    %v1030 = vld [vmem:[#allocation14 + $0xa8] sm:$0xf]
    %v1031 = vld [vmem:[#allocation14 + $0xac] sm:$0xf]
    %v1032 = vld [vmem:[#allocation14 + $0xb0] sm:$0xf]
    %v1033 = vld [vmem:[#allocation14 + $0xb4] sm:$0xf]
    %v1034 = vld [vmem:[#allocation14 + $0xb8] sm:$0xf]
    %v1035 = vld [vmem:[#allocation14 + $0xbc] sm:$0xf]
    %v1036 = vld [vmem:[#allocation14 + $0xc0] sm:$0xf]
    %v1037 = vld [vmem:[#allocation14 + $0xc4] sm:$0xf]
    %v1038 = vld [vmem:[#allocation14 + $0xc8] sm:$0xf]
    %v1039 = vld [vmem:[#allocation14 + $0xcc] sm:$0xf]
    %v1040 = vld [vmem:[#allocation14 + $0xd0] sm:$0xf]
    %v1041 = vld [vmem:[#allocation14 + $0xd4] sm:$0xf]
    %v1042 = vld [vmem:[#allocation14 + $0xd8] sm:$0xf]
    %v1043 = vld [vmem:[#allocation14 + $0xdc] sm:$0xf]
    %v1044 = vld [vmem:[#allocation14 + $0xe0] sm:$0xf]
    %v1045 = vld [vmem:[#allocation14 + $0xe4] sm:$0xf]
    %v1046 = vld [vmem:[#allocation14 + $0xe8] sm:$0xf]
    %v1047 = vld [vmem:[#allocation14 + $0xec] sm:$0xf]
    %v1048 = vld [vmem:[#allocation14 + $0xf0] sm:$0xf]
    %v1049 = vld [vmem:[#allocation14 + $0xf4] sm:$0xf]
    %v1050 = vld [vmem:[#allocation14 + $0xf8] sm:$0xf]
    %v1051 = vld [vmem:[#allocation14 + $0xfc] sm:$0xf]
    %v1052 = vld [vmem:[#allocation14 + $0x100] sm:$0xf]
    %v1053 = vld [vmem:[#allocation14 + $0x104] sm:$0xf]
    %v1054 = vld [vmem:[#allocation14 + $0x108] sm:$0xf]
    %v1055 = vld [vmem:[#allocation14 + $0x10c] sm:$0xf]
    %v1056 = vld [vmem:[#allocation14 + $0x110] sm:$0xf]
    %v1057 = vld [vmem:[#allocation14 + $0x114] sm:$0xf]
    %v1058 = vld [vmem:[#allocation14 + $0x118] sm:$0xf]
    %v1059 = vld [vmem:[#allocation14 + $0x11c] sm:$0xf]
    %v1060 = vld [vmem:[#allocation14 + $0x120] sm:$0xf]
    %v1061 = vld [vmem:[#allocation14 + $0x124] sm:$0xf]
    %v1062 = vld [vmem:[#allocation14 + $0x128] sm:$0xf]
    %v1063 = vld [vmem:[#allocation14 + $0x12c] sm:$0xf]
    %v1064 = vld [vmem:[#allocation14 + $0x130] sm:$0xf]
    %v1065 = vld [vmem:[#allocation14 + $0x134] sm:$0xf]
    %v1066 = vld [vmem:[#allocation14 + $0x138] sm:$0xf]
    %v1067 = vld [vmem:[#allocation14 + $0x13c] sm:$0xf]
    %v1068 = vld [vmem:[#allocation14 + $0x140] sm:$0xf]
    %v1069 = vld [vmem:[#allocation14 + $0x144] sm:$0xf]
    %v1070 = vld [vmem:[#allocation14 + $0x148] sm:$0xf]
    %v1071 = vld [vmem:[#allocation14 + $0x14c] sm:$0xf]
    %v1072 = vld [vmem:[#allocation14 + $0x150] sm:$0xf]
    %v1073 = vld [vmem:[#allocation14 + $0x154] sm:$0xf]
    %v1074 = vld [vmem:[#allocation14 + $0x158] sm:$0xf]
    %v1075 = vld [vmem:[#allocation14 + $0x15c] sm:$0xf]
    %v1076 = vld [vmem:[#allocation14 + $0x160] sm:$0xf]
    %v1077 = vld [vmem:[#allocation14 + $0x164] sm:$0xf]
    %v1078 = vld [vmem:[#allocation14 + $0x168] sm:$0xf]
    %v1079 = vld [vmem:[#allocation14 + $0x16c] sm:$0xf]
    %v1080 = vld [vmem:[#allocation14 + $0x170] sm:$0xf]
    %v1081 = vld [vmem:[#allocation14 + $0x174] sm:$0xf]
    %v1082 = vld [vmem:[#allocation14 + $0x178] sm:$0xf]
    %v1083 = vld [vmem:[#allocation14 + $0x17c] sm:$0xf]
    %v1084 = vld [vmem:[#allocation14 + $0x180] sm:$0xf]
    %v1085 = vld [vmem:[#allocation14 + $0x184] sm:$0xf]
    %v1086 = vld [vmem:[#allocation14 + $0x188] sm:$0xf]
    %v1087 = vld [vmem:[#allocation14 + $0x18c] sm:$0xf]
    %v1088 = vld [vmem:[#allocation14 + $0x190] sm:$0xf]
    %v1089 = vld [vmem:[#allocation14 + $0x194] sm:$0xf]
    %v1090 = vld [vmem:[#allocation14 + $0x198] sm:$0xf]
    %v1091 = vld [vmem:[#allocation14 + $0x19c] sm:$0xf]
    %v1092 = vld [vmem:[#allocation14 + $0x1a0] sm:$0xf]
    %v1093 = vld [vmem:[#allocation14 + $0x1a4] sm:$0xf]
    %v1094 = vld [vmem:[#allocation14 + $0x1a8] sm:$0xf]
    %v1095 = vld [vmem:[#allocation14 + $0x1ac] sm:$0xf]
    %v1096 = vld [vmem:[#allocation14 + $0x1b0] sm:$0xf]
    %v1097 = vld [vmem:[#allocation14 + $0x1b4] sm:$0xf]
    %v1098 = vld [vmem:[#allocation14 + $0x1b8] sm:$0xf]
    %v1099 = vld [vmem:[#allocation14 + $0x1bc] sm:$0xf]
    %v1100 = vld [vmem:[#allocation14 + $0x1c0] sm:$0xf]
    %v1101 = vld [vmem:[#allocation14 + $0x1c4] sm:$0xf]
    %v1102 = vld [vmem:[#allocation14 + $0x1c8] sm:$0xf]
    %v1103 = vld [vmem:[#allocation14 + $0x1cc] sm:$0xf]
    %v1104 = vld [vmem:[#allocation14 + $0x1d0] sm:$0xf]
    %v1105 = vld [vmem:[#allocation14 + $0x1d4] sm:$0xf]
    %v1106 = vld [vmem:[#allocation14 + $0x1d8] sm:$0xf]
    %v1107 = vld [vmem:[#allocation14 + $0x1dc] sm:$0xf]
    %v1108 = vld [vmem:[#allocation14 + $0x1e0] sm:$0xf]
    %v1109 = vld [vmem:[#allocation14 + $0x1e4] sm:$0xf]
    %v1110 = vld [vmem:[#allocation14 + $0x1e8] sm:$0xf]
    %v1111 = vld [vmem:[#allocation14 + $0x1ec] sm:$0xf]
    %v1112 = vld [vmem:[#allocation14 + $0x1f0] sm:$0xf]
    %v1113 = vld [vmem:[#allocation14 + $0x1f4] sm:$0xf]
    %v1114 = vld [vmem:[#allocation14 + $0x1f8] sm:$0xf]
    %v1115 = vld [vmem:[#allocation14 + $0x1fc] sm:$0xf]
    %1117 = vst [vmem:[#allocation1] ss:$9 sm:$0xff] %v987
    %v1118 = vld [vmem:[#allocation1] sm:$0xff]
    %v1119 = vld [vmem:[#allocation1 + $0x9] sm:$0xff]
    %v1120 = vld [vmem:[#allocation1 + $0x12] sm:$0xff]
    %v1121 = vld [vmem:[#allocation1 + $0x1b] sm:$0xff]
    %v1122 = vld [vmem:[#allocation1 + $0x24] sm:$0xff]
    %v1123 = vld [vmem:[#allocation1 + $0x2d] sm:$0xff]
    %v1124 = vld [vmem:[#allocation1 + $0x36] sm:$0xff]
    %v1125 = vld [vmem:[#allocation1 + $0x3f] sm:$0xff]
    %v1262 = vunpack.c.l.b16 %v988
    %v1263 = vunpack.c.l.b16 %v989
    %v1264 = vunpack.c.l.b16 %v990
    %v1265 = vunpack.c.l.b16 %v991
    %v1266 = vunpack.c.l.b16 %v992
    %v1267 = vunpack.c.l.b16 %v993
    %v1268 = vunpack.c.l.b16 %v994
    %v1269 = vunpack.c.l.b16 %v995
    %v1270 = vunpack.c.l.b16 %v996
    %v1271 = vunpack.c.l.b16 %v997
    %v1272 = vunpack.c.l.b16 %v998
    %v1273 = vunpack.c.l.b16 %v999
    %v1274 = vunpack.c.l.b16 %v1000
    %v1275 = vunpack.c.l.b16 %v1001
    %v1276 = vunpack.c.l.b16 %v1002
    %v1277 = vunpack.c.l.b16 %v1003
    %v1278 = vunpack.c.l.b16 %v1004
    %v1279 = vunpack.c.l.b16 %v1005
    %v1280 = vunpack.c.l.b16 %v1006
    %v1281 = vunpack.c.l.b16 %v1007
    %v1282 = vunpack.c.l.b16 %v1008
    %v1283 = vunpack.c.l.b16 %v1009
    %v1284 = vunpack.c.l.b16 %v1010
    %v1285 = vunpack.c.l.b16 %v1011
    %v1286 = vunpack.c.l.b16 %v1012
    %v1287 = vunpack.c.l.b16 %v1013
    %v1288 = vunpack.c.l.b16 %v1014
    %v1289 = vunpack.c.l.b16 %v1015
    %v1290 = vunpack.c.l.b16 %v1016
    %v1291 = vunpack.c.l.b16 %v1017
    %v1292 = vunpack.c.l.b16 %v1018
    %v1293 = vunpack.c.l.b16 %v1019
    %v1294 = vunpack.c.l.b16 %v1020
    %v1295 = vunpack.c.l.b16 %v1021
    %v1296 = vunpack.c.l.b16 %v1022
    %v1297 = vunpack.c.l.b16 %v1023
    %v1298 = vunpack.c.l.b16 %v1024
    %v1299 = vunpack.c.l.b16 %v1025
    %v1300 = vunpack.c.l.b16 %v1026
    %v1301 = vunpack.c.l.b16 %v1027
    %v1302 = vunpack.c.l.b16 %v1028
    %v1303 = vunpack.c.l.b16 %v1029
    %v1304 = vunpack.c.l.b16 %v1030
    %v1305 = vunpack.c.l.b16 %v1031
    %v1306 = vunpack.c.l.b16 %v1032
    %v1307 = vunpack.c.l.b16 %v1033
    %v1308 = vunpack.c.l.b16 %v1034
    %v1309 = vunpack.c.l.b16 %v1035
    %v1310 = vunpack.c.l.b16 %v1036
    %v1311 = vunpack.c.l.b16 %v1037
    %v1312 = vunpack.c.l.b16 %v1038
    %v1313 = vunpack.c.l.b16 %v1039
    %v1314 = vunpack.c.l.b16 %v1040
    %v1315 = vunpack.c.l.b16 %v1041
    %v1316 = vunpack.c.l.b16 %v1042
    %v1317 = vunpack.c.l.b16 %v1043
    %v1318 = vunpack.c.l.b16 %v1044
    %v1319 = vunpack.c.l.b16 %v1045
    %v1320 = vunpack.c.l.b16 %v1046
    %v1321 = vunpack.c.l.b16 %v1047
    %v1322 = vunpack.c.l.b16 %v1048
    %v1323 = vunpack.c.l.b16 %v1049
    %v1324 = vunpack.c.l.b16 %v1050
    %v1325 = vunpack.c.l.b16 %v1051
    %v1326 = vunpack.c.l.b16 %v1052
    %v1327 = vunpack.c.l.b16 %v1053
    %v1328 = vunpack.c.l.b16 %v1054
    %v1329 = vunpack.c.l.b16 %v1055
    %v1330 = vunpack.c.l.b16 %v1056
    %v1331 = vunpack.c.l.b16 %v1057
    %v1332 = vunpack.c.l.b16 %v1058
    %v1333 = vunpack.c.l.b16 %v1059
    %v1334 = vunpack.c.l.b16 %v1060
    %v1335 = vunpack.c.l.b16 %v1061
    %v1336 = vunpack.c.l.b16 %v1062
    %v1337 = vunpack.c.l.b16 %v1063
    %v1338 = vunpack.c.l.b16 %v1064
    %v1339 = vunpack.c.l.b16 %v1065
    %v1340 = vunpack.c.l.b16 %v1066
    %v1341 = vunpack.c.l.b16 %v1067
    %v1342 = vunpack.c.l.b16 %v1068
    %v1343 = vunpack.c.l.b16 %v1069
    %v1344 = vunpack.c.l.b16 %v1070
    %v1345 = vunpack.c.l.b16 %v1071
    %v1346 = vunpack.c.l.b16 %v1072
    %v1347 = vunpack.c.l.b16 %v1073
    %v1348 = vunpack.c.l.b16 %v1074
    %v1349 = vunpack.c.l.b16 %v1075
    %v1350 = vunpack.c.l.b16 %v1076
    %v1351 = vunpack.c.l.b16 %v1077
    %v1352 = vunpack.c.l.b16 %v1078
    %v1353 = vunpack.c.l.b16 %v1079
    %v1354 = vunpack.c.l.b16 %v1080
    %v1355 = vunpack.c.l.b16 %v1081
    %v1356 = vunpack.c.l.b16 %v1082
    %v1357 = vunpack.c.l.b16 %v1083
    %v1358 = vunpack.c.l.b16 %v1084
    %v1359 = vunpack.c.l.b16 %v1085
    %v1360 = vunpack.c.l.b16 %v1086
    %v1361 = vunpack.c.l.b16 %v1087
    %v1362 = vunpack.c.l.b16 %v1088
    %v1363 = vunpack.c.l.b16 %v1089
    %v1364 = vunpack.c.l.b16 %v1090
    %v1365 = vunpack.c.l.b16 %v1091
    %v1366 = vunpack.c.l.b16 %v1092
    %v1367 = vunpack.c.l.b16 %v1093
    %v1368 = vunpack.c.l.b16 %v1094
    %v1369 = vunpack.c.l.b16 %v1095
    %v1370 = vunpack.c.l.b16 %v1096
    %v1371 = vunpack.c.l.b16 %v1097
    %v1372 = vunpack.c.l.b16 %v1098
    %v1373 = vunpack.c.l.b16 %v1099
    %v1374 = vunpack.c.l.b16 %v1100
    %v1375 = vunpack.c.l.b16 %v1101
    %v1376 = vunpack.c.l.b16 %v1102
    %v1377 = vunpack.c.l.b16 %v1103
    %v1378 = vunpack.c.l.b16 %v1104
    %v1379 = vunpack.c.l.b16 %v1105
    %v1380 = vunpack.c.l.b16 %v1106
    %v1381 = vunpack.c.l.b16 %v1107
    %v1382 = vunpack.c.l.b16 %v1108
    %v1383 = vunpack.c.l.b16 %v1109
    %v1384 = vunpack.c.l.b16 %v1110
    %v1385 = vunpack.c.l.b16 %v1111
    %v1386 = vunpack.c.l.b16 %v1112
    %v1387 = vunpack.c.l.b16 %v1113
    %v1388 = vunpack.c.l.b16 %v1114
    %v1389 = vunpack.c.l.b16 %v1115
    %v1390 = vpack.c.b16 %v1263, %v1262
    %v1391 = vpack.c.b16 %v1265, %v1264
    %v1392 = vpack.c.b16 %v1267, %v1266
    %v1393 = vpack.c.b16 %v1269, %v1268
    %v1394 = vpack.c.b16 %v1271, %v1270
    %v1395 = vpack.c.b16 %v1273, %v1272
    %v1396 = vpack.c.b16 %v1275, %v1274
    %v1397 = vpack.c.b16 %v1277, %v1276
    %v1398 = vpack.c.b16 %v1279, %v1278
    %v1399 = vpack.c.b16 %v1281, %v1280
    %v1400 = vpack.c.b16 %v1283, %v1282
    %v1401 = vpack.c.b16 %v1285, %v1284
    %v1402 = vpack.c.b16 %v1287, %v1286
    %v1403 = vpack.c.b16 %v1289, %v1288
    %v1404 = vpack.c.b16 %v1291, %v1290
    %v1405 = vpack.c.b16 %v1293, %v1292
    %v1406 = vpack.c.b16 %v1295, %v1294
    %v1407 = vpack.c.b16 %v1297, %v1296
    %v1408 = vpack.c.b16 %v1299, %v1298
    %v1409 = vpack.c.b16 %v1301, %v1300
    %v1410 = vpack.c.b16 %v1303, %v1302
    %v1411 = vpack.c.b16 %v1305, %v1304
    %v1412 = vpack.c.b16 %v1307, %v1306
    %v1413 = vpack.c.b16 %v1309, %v1308
    %v1414 = vpack.c.b16 %v1311, %v1310
    %v1415 = vpack.c.b16 %v1313, %v1312
    %v1416 = vpack.c.b16 %v1315, %v1314
    %v1417 = vpack.c.b16 %v1317, %v1316
    %v1418 = vpack.c.b16 %v1319, %v1318
    %v1419 = vpack.c.b16 %v1321, %v1320
    %v1420 = vpack.c.b16 %v1323, %v1322
    %v1421 = vpack.c.b16 %v1325, %v1324
    %v1422 = vpack.c.b16 %v1327, %v1326
    %v1423 = vpack.c.b16 %v1329, %v1328
    %v1424 = vpack.c.b16 %v1331, %v1330
    %v1425 = vpack.c.b16 %v1333, %v1332
    %v1426 = vpack.c.b16 %v1335, %v1334
    %v1427 = vpack.c.b16 %v1337, %v1336
    %v1428 = vpack.c.b16 %v1339, %v1338
    %v1429 = vpack.c.b16 %v1341, %v1340
    %v1430 = vpack.c.b16 %v1343, %v1342
    %v1431 = vpack.c.b16 %v1345, %v1344
    %v1432 = vpack.c.b16 %v1347, %v1346
    %v1433 = vpack.c.b16 %v1349, %v1348
    %v1434 = vpack.c.b16 %v1351, %v1350
    %v1435 = vpack.c.b16 %v1353, %v1352
    %v1436 = vpack.c.b16 %v1355, %v1354
    %v1437 = vpack.c.b16 %v1357, %v1356
    %v1438 = vpack.c.b16 %v1359, %v1358
    %v1439 = vpack.c.b16 %v1361, %v1360
    %v1440 = vpack.c.b16 %v1363, %v1362
    %v1441 = vpack.c.b16 %v1365, %v1364
    %v1442 = vpack.c.b16 %v1367, %v1366
    %v1443 = vpack.c.b16 %v1369, %v1368
    %v1444 = vpack.c.b16 %v1371, %v1370
    %v1445 = vpack.c.b16 %v1373, %v1372
    %v1446 = vpack.c.b16 %v1375, %v1374
    %v1447 = vpack.c.b16 %v1377, %v1376
    %v1448 = vpack.c.b16 %v1379, %v1378
    %v1449 = vpack.c.b16 %v1381, %v1380
    %v1450 = vpack.c.b16 %v1383, %v1382
    %v1451 = vpack.c.b16 %v1385, %v1384
    %v1452 = vpack.c.b16 %v1387, %v1386
    %v1453 = vpack.c.b16 %v1389, %v1388
    %1518 = vmatpush.bf16.msra.mxu0 %v1397
    %1519 = vmatpush.bf16.msra.mxu0 %v1396
    %1520 = vmatpush.bf16.msra.mxu0 %v1395
    %1521 = vmatpush.bf16.msra.mxu0 %v1394
    %1522 = vmatpush.bf16.msra.mxu0 %v1393
    %1523 = vmatpush.bf16.msra.mxu0 %v1392
    %1524 = vmatpush.bf16.msra.mxu0 %v1391
    %1525 = vmatpush.bf16.msra.mxu0 %v1390
    %1526 = vmatmul.bf16.gmra.mxu0 %v1118
    %v1527 = vpop.f32.mrf.mxu0
    %v1528 = vadd.f32 0.0, %v1527
    %v1529 = vpop.f32.mrf.mxu0
    %1530 = vdwg.mxu0
    %1531 = vmatpush.bf16.msra.mxu0 %v1405
    %1532 = vmatpush.bf16.msra.mxu0 %v1404
    %1533 = vmatpush.bf16.msra.mxu0 %v1403
    %1534 = vmatpush.bf16.msra.mxu0 %v1402
    %1535 = vmatpush.bf16.msra.mxu0 %v1401
    %1536 = vmatpush.bf16.msra.mxu0 %v1400
    %1537 = vmatpush.bf16.msra.mxu0 %v1399
    %1538 = vmatpush.bf16.msra.mxu0 %v1398
    %1539 = vmatmul.bf16.gmra.mxu0 %v1119
    %v1540 = vpop.f32.mrf.mxu0
    %v1541 = vadd.f32 %v1528, %v1540
    %v1542 = vpop.f32.mrf.mxu0
    %1543 = vdwg.mxu0
    %1544 = vmatpush.bf16.msra.mxu0 %v1413
    %1545 = vmatpush.bf16.msra.mxu0 %v1412
    %1546 = vmatpush.bf16.msra.mxu0 %v1411
    %1547 = vmatpush.bf16.msra.mxu0 %v1410
    %1548 = vmatpush.bf16.msra.mxu0 %v1409
    %1549 = vmatpush.bf16.msra.mxu0 %v1408
    %1550 = vmatpush.bf16.msra.mxu0 %v1407
    %1551 = vmatpush.bf16.msra.mxu0 %v1406
    %1552 = vmatmul.bf16.gmra.mxu0 %v1120
    %v1553 = vpop.f32.mrf.mxu0
    %v1554 = vadd.f32 %v1541, %v1553
    %v1555 = vpop.f32.mrf.mxu0
    %1556 = vdwg.mxu0
    %1557 = vmatpush.bf16.msra.mxu0 %v1421
    %1558 = vmatpush.bf16.msra.mxu0 %v1420
    %1559 = vmatpush.bf16.msra.mxu0 %v1419
    %1560 = vmatpush.bf16.msra.mxu0 %v1418
    %1561 = vmatpush.bf16.msra.mxu0 %v1417
    %1562 = vmatpush.bf16.msra.mxu0 %v1416
    %1563 = vmatpush.bf16.msra.mxu0 %v1415
    %1564 = vmatpush.bf16.msra.mxu0 %v1414
    %1565 = vmatmul.bf16.gmra.mxu0 %v1121
    %v1566 = vpop.f32.mrf.mxu0
    %v1567 = vadd.f32 %v1554, %v1566
    %v1568 = vpop.f32.mrf.mxu0
    %1569 = vdwg.mxu0
    %1570 = vmatpush.bf16.msra.mxu0 %v1429
    %1571 = vmatpush.bf16.msra.mxu0 %v1428
    %1572 = vmatpush.bf16.msra.mxu0 %v1427
    %1573 = vmatpush.bf16.msra.mxu0 %v1426
    %1574 = vmatpush.bf16.msra.mxu0 %v1425
    %1575 = vmatpush.bf16.msra.mxu0 %v1424
    %1576 = vmatpush.bf16.msra.mxu0 %v1423
    %1577 = vmatpush.bf16.msra.mxu0 %v1422
    %1578 = vmatmul.bf16.gmra.mxu0 %v1122
    %v1579 = vpop.f32.mrf.mxu0
    %v1580 = vadd.f32 %v1567, %v1579
    %v1581 = vpop.f32.mrf.mxu0
    %1582 = vdwg.mxu0
    %1583 = vmatpush.bf16.msra.mxu0 %v1437
    %1584 = vmatpush.bf16.msra.mxu0 %v1436
    %1585 = vmatpush.bf16.msra.mxu0 %v1435
    %1586 = vmatpush.bf16.msra.mxu0 %v1434
    %1587 = vmatpush.bf16.msra.mxu0 %v1433
    %1588 = vmatpush.bf16.msra.mxu0 %v1432
    %1589 = vmatpush.bf16.msra.mxu0 %v1431
    %1590 = vmatpush.bf16.msra.mxu0 %v1430
    %1591 = vmatmul.bf16.gmra.mxu0 %v1123
    %v1592 = vpop.f32.mrf.mxu0
    %v1593 = vadd.f32 %v1580, %v1592
    %v1594 = vpop.f32.mrf.mxu0
    %1595 = vdwg.mxu0
    %1596 = vmatpush.bf16.msra.mxu0 %v1445
    %1597 = vmatpush.bf16.msra.mxu0 %v1444
    %1598 = vmatpush.bf16.msra.mxu0 %v1443
    %1599 = vmatpush.bf16.msra.mxu0 %v1442
    %1600 = vmatpush.bf16.msra.mxu0 %v1441
    %1601 = vmatpush.bf16.msra.mxu0 %v1440
    %1602 = vmatpush.bf16.msra.mxu0 %v1439
    %1603 = vmatpush.bf16.msra.mxu0 %v1438
    %1604 = vmatmul.bf16.gmra.mxu0 %v1124
    %v1605 = vpop.f32.mrf.mxu0
    %v1606 = vadd.f32 %v1593, %v1605
    %v1607 = vpop.f32.mrf.mxu0
    %1608 = vdwg.mxu0
    %1609 = vmatpush.bf16.msra.mxu0 %v1453
    %1610 = vmatpush.bf16.msra.mxu0 %v1452
    %1611 = vmatpush.bf16.msra.mxu0 %v1451
    %1612 = vmatpush.bf16.msra.mxu0 %v1450
    %1613 = vmatpush.bf16.msra.mxu0 %v1449
    %1614 = vmatpush.bf16.msra.mxu0 %v1448
    %1615 = vmatpush.bf16.msra.mxu0 %v1447
    %1616 = vmatpush.bf16.msra.mxu0 %v1446
    %1617 = vmatmul.bf16.gmra.mxu0 %v1125
    %v1618 = vpop.f32.mrf.mxu0
    %v1619 = vadd.f32 %v1606, %v1618
    %v1620 = vpop.f32.mrf.mxu0
    %1621 = vdwg.mxu0
    %v1638 = vunpack.c.l.b16 %v971
    %v1639 = vunpack.c.l.b16 %v972
    %v1640 = vunpack.c.l.b16 %v973
    %v1641 = vunpack.c.l.b16 %v974
    %v1642 = vunpack.c.l.b16 %v975
    %v1643 = vunpack.c.l.b16 %v976
    %v1644 = vunpack.c.l.b16 %v977
    %v1645 = vunpack.c.l.b16 %v978
    %v1646 = vunpack.c.l.b16 %v979
    %v1647 = vunpack.c.l.b16 %v980
    %v1648 = vunpack.c.l.b16 %v981
    %v1649 = vunpack.c.l.b16 %v982
    %v1650 = vunpack.c.l.b16 %v983
    %v1651 = vunpack.c.l.b16 %v984
    %v1652 = vunpack.c.l.b16 %v985
    %v1653 = vunpack.c.l.b16 %v986
    %v1654 = vpack.c.b16 %v1639, %v1638
    %v1655 = vpack.c.b16 %v1641, %v1640
    %v1656 = vpack.c.b16 %v1643, %v1642
    %v1657 = vpack.c.b16 %v1645, %v1644
    %v1658 = vpack.c.b16 %v1647, %v1646
    %v1659 = vpack.c.b16 %v1649, %v1648
    %v1660 = vpack.c.b16 %v1651, %v1650
    %v1661 = vpack.c.b16 %v1653, %v1652
    %1670 = vmatpush.bf16.msra.mxu0 %v1661
    %1671 = vmatpush.bf16.msra.mxu0 %v1660
    %1672 = vmatpush.bf16.msra.mxu0 %v1659
    %1673 = vmatpush.bf16.msra.mxu0 %v1658
    %1674 = vmatpush.bf16.msra.mxu0 %v1657
    %1675 = vmatpush.bf16.msra.mxu0 %v1656
    %1676 = vmatpush.bf16.msra.mxu0 %v1655
    %1677 = vmatpush.bf16.msra.mxu0 %v1654
    %1678 = vmatmul.bf16.gmra.mxu0 %v970
    %v1679 = vpop.f32.mrf.mxu0
    %v1680 = vadd.f32 %v1619, %v1679
    %v1681 = vpop.f32.mrf.mxu0
    %1682 = vdwg.mxu0
    %v1683 = vld [vmem:[%s5] sm:$0x3]
    %v1684 = vld [vmem:[#allocation16] sm:$0xf]
    %v1685 = vld [vmem:[#allocation16 + $0x4] sm:$0xf]
    %v1686 = vld [vmem:[#allocation16 + $0x8] sm:$0xf]
    %v1687 = vld [vmem:[#allocation16 + $0xc] sm:$0xf]
    %v1688 = vld [vmem:[#allocation16 + $0x10] sm:$0xf]
    %v1689 = vld [vmem:[#allocation16 + $0x14] sm:$0xf]
    %v1690 = vld [vmem:[#allocation16 + $0x18] sm:$0xf]
    %v1691 = vld [vmem:[#allocation16 + $0x1c] sm:$0xf]
    %v1692 = vld [vmem:[#allocation16 + $0x20] sm:$0xf]
    %v1693 = vld [vmem:[#allocation16 + $0x24] sm:$0xf]
    %v1694 = vld [vmem:[#allocation16 + $0x28] sm:$0xf]
    %v1695 = vld [vmem:[#allocation16 + $0x2c] sm:$0xf]
    %v1696 = vld [vmem:[#allocation16 + $0x30] sm:$0xf]
    %v1697 = vld [vmem:[#allocation16 + $0x34] sm:$0xf]
    %v1698 = vld [vmem:[#allocation16 + $0x38] sm:$0xf]
    %v1699 = vld [vmem:[#allocation16 + $0x3c] sm:$0xf]
    %v1700 = vld [vmem:[#allocation16 + $0x40] sm:$0xf]
    %v1701 = vld [vmem:[#allocation16 + $0x44] sm:$0xf]
    %v1702 = vld [vmem:[#allocation16 + $0x48] sm:$0xf]
    %v1703 = vld [vmem:[#allocation16 + $0x4c] sm:$0xf]
    %v1704 = vld [vmem:[#allocation16 + $0x50] sm:$0xf]
    %v1705 = vld [vmem:[#allocation16 + $0x54] sm:$0xf]
    %v1706 = vld [vmem:[#allocation16 + $0x58] sm:$0xf]
    %v1707 = vld [vmem:[#allocation16 + $0x5c] sm:$0xf]
    %v1708 = vld [vmem:[#allocation16 + $0x60] sm:$0xf]
    %v1709 = vld [vmem:[#allocation16 + $0x64] sm:$0xf]
    %v1710 = vld [vmem:[#allocation16 + $0x68] sm:$0xf]
    %v1711 = vld [vmem:[#allocation16 + $0x6c] sm:$0xf]
    %v1712 = vld [vmem:[#allocation16 + $0x70] sm:$0xf]
    %v1713 = vld [vmem:[#allocation16 + $0x74] sm:$0xf]
    %v1714 = vld [vmem:[#allocation16 + $0x78] sm:$0xf]
    %v1715 = vld [vmem:[#allocation16 + $0x7c] sm:$0xf]
    %1717 = vst [vmem:[#allocation1] ss:$9 sm:$0xff] %v1683
    %v1718 = vld [vmem:[#allocation1] sm:$0xff]
    %v1719 = vld [vmem:[#allocation1 + $0x9] sm:$0xff]
    %v1754 = vunpack.c.l.b16 %v1684
    %v1755 = vunpack.c.l.b16 %v1685
    %v1756 = vunpack.c.l.b16 %v1686
    %v1757 = vunpack.c.l.b16 %v1687
    %v1758 = vunpack.c.l.b16 %v1688
    %v1759 = vunpack.c.l.b16 %v1689
    %v1760 = vunpack.c.l.b16 %v1690
    %v1761 = vunpack.c.l.b16 %v1691
    %v1762 = vunpack.c.l.b16 %v1692
    %v1763 = vunpack.c.l.b16 %v1693
    %v1764 = vunpack.c.l.b16 %v1694
    %v1765 = vunpack.c.l.b16 %v1695
    %v1766 = vunpack.c.l.b16 %v1696
    %v1767 = vunpack.c.l.b16 %v1697
    %v1768 = vunpack.c.l.b16 %v1698
    %v1769 = vunpack.c.l.b16 %v1699
    %v1770 = vunpack.c.l.b16 %v1700
    %v1771 = vunpack.c.l.b16 %v1701
    %v1772 = vunpack.c.l.b16 %v1702
    %v1773 = vunpack.c.l.b16 %v1703
    %v1774 = vunpack.c.l.b16 %v1704
    %v1775 = vunpack.c.l.b16 %v1705
    %v1776 = vunpack.c.l.b16 %v1706
    %v1777 = vunpack.c.l.b16 %v1707
    %v1778 = vunpack.c.l.b16 %v1708
    %v1779 = vunpack.c.l.b16 %v1709
    %v1780 = vunpack.c.l.b16 %v1710
    %v1781 = vunpack.c.l.b16 %v1711
    %v1782 = vunpack.c.l.b16 %v1712
    %v1783 = vunpack.c.l.b16 %v1713
    %v1784 = vunpack.c.l.b16 %v1714
    %v1785 = vunpack.c.l.b16 %v1715
    %v1786 = vpack.c.b16 %v1755, %v1754
    %v1787 = vpack.c.b16 %v1757, %v1756
    %v1788 = vpack.c.b16 %v1759, %v1758
    %v1789 = vpack.c.b16 %v1761, %v1760
    %v1790 = vpack.c.b16 %v1763, %v1762
    %v1791 = vpack.c.b16 %v1765, %v1764
    %v1792 = vpack.c.b16 %v1767, %v1766
    %v1793 = vpack.c.b16 %v1769, %v1768
    %v1794 = vpack.c.b16 %v1771, %v1770
    %v1795 = vpack.c.b16 %v1773, %v1772
    %v1796 = vpack.c.b16 %v1775, %v1774
    %v1797 = vpack.c.b16 %v1777, %v1776
    %v1798 = vpack.c.b16 %v1779, %v1778
    %v1799 = vpack.c.b16 %v1781, %v1780
    %v1800 = vpack.c.b16 %v1783, %v1782
    %v1801 = vpack.c.b16 %v1785, %v1784
    %1818 = vmatpush.bf16.msra.mxu0 %v1793
    %1819 = vmatpush.bf16.msra.mxu0 %v1792
    %1820 = vmatpush.bf16.msra.mxu0 %v1791
    %1821 = vmatpush.bf16.msra.mxu0 %v1790
    %1822 = vmatpush.bf16.msra.mxu0 %v1789
    %1823 = vmatpush.bf16.msra.mxu0 %v1788
    %1824 = vmatpush.bf16.msra.mxu0 %v1787
    %1825 = vmatpush.bf16.msra.mxu0 %v1786
    %1826 = vmatmul.bf16.gmra.mxu0 %v1718
    %v1827 = vpop.f32.mrf.mxu0
    %v1828 = vadd.f32 0.0, %v1827
    %v1829 = vpop.f32.mrf.mxu0
    %1830 = vdwg.mxu0
    %1831 = vmatpush.bf16.msra.mxu0 %v1801
    %1832 = vmatpush.bf16.msra.mxu0 %v1800
    %1833 = vmatpush.bf16.msra.mxu0 %v1799
    %1834 = vmatpush.bf16.msra.mxu0 %v1798
    %1835 = vmatpush.bf16.msra.mxu0 %v1797
    %1836 = vmatpush.bf16.msra.mxu0 %v1796
    %1837 = vmatpush.bf16.msra.mxu0 %v1795
    %1838 = vmatpush.bf16.msra.mxu0 %v1794
    %1839 = vmatmul.bf16.gmra.mxu0 %v1719
    %v1840 = vpop.f32.mrf.mxu0
    %v1841 = vadd.f32 %v1828, %v1840
    %v1842 = vpop.f32.mrf.mxu0
    %1843 = vdwg.mxu0
    %v1844 = vadd.f32 %v1680, %v1841
    %v1845 = vld [vmem:[%s19] sm:$0x1]
    %v1847 = vperm.slane %v1845, 0
    %v1849 = vadd.f32 %v1844, %v1847
    %v1850 = vmul.f32 %v1849, %v1849
    %v1851 = vmul.f32 %v1849, %v1850
    %v1852 = vmul.f32 %v1851, 0.044715
    %v1853 = vadd.f32 %v1849, %v1852
    %v1854 = vmul.f32 %v1853, 0.7978846
    %v1855 = vtanh.pop %v1854
    %v1856 = vadd.f32 %v1855, 1.0
    %v1857 = vmul.f32 %v1856, 0.5
    %v1858 = vmul.f32 %v1849, %v1857
    %v1859 = vld [vmem:[%s20] sm:$0xff]
    %v1860 = vld [vmem:[%s20 + $0x8] sm:$0xff]
    %v1861 = vld [vmem:[%s20 + $0x10] sm:$0xff]
    %v1862 = vld [vmem:[%s20 + $0x18] sm:$0xff]
    %v1863 = vld [vmem:[%s20 + $0x20] sm:$0xff]
    %v1864 = vld [vmem:[%s20 + $0x28] sm:$0xff]
    %v1865 = vld [vmem:[%s20 + $0x30] sm:$0xff]
    %v1866 = vld [vmem:[%s20 + $0x38] sm:$0xff]
    %v1867 = vld [vmem:[%s20 + $0x40] sm:$0xff]
    %v1868 = vld [vmem:[%s20 + $0x48] sm:$0xff]
    %v1869 = vld [vmem:[%s20 + $0x50] sm:$0xff]
    %v1870 = vld [vmem:[%s20 + $0x58] sm:$0xff]
    %v1871 = vld [vmem:[%s20 + $0x60] sm:$0xff]
    %v1872 = vld [vmem:[%s20 + $0x68] sm:$0xff]
    %v1873 = vld [vmem:[%s20 + $0x70] sm:$0xff]
    %v1874 = vld [vmem:[%s20 + $0x78] sm:$0xff]
    %v1875 = vld [vmem:[%s21] sm:$0x1]
    %v1877 = vperm.slane %v1875, 0
    %1879 = vmatpush.msra.mxu0 %v1874
    %1880 = vmatpush.msra.mxu0 %v1873
    %1881 = vmatpush.msra.mxu0 %v1872
    %1882 = vmatpush.msra.mxu0 %v1871
    %1883 = vmatpush.msra.mxu0 %v1870
    %1884 = vmatpush.msra.mxu0 %v1869
    %1885 = vmatpush.msra.mxu0 %v1868
    %1886 = vmatpush.msra.mxu0 %v1867
    %1887 = vmatpush.msra.mxu0 %v1866
    %1888 = vmatpush.msra.mxu0 %v1865
    %1889 = vmatpush.msra.mxu0 %v1864
    %1890 = vmatpush.msra.mxu0 %v1863
    %1891 = vmatpush.msra.mxu0 %v1862
    %1892 = vmatpush.msra.mxu0 %v1861
    %1893 = vmatpush.msra.mxu0 %v1860
    %1894 = vmatpush.msra.mxu0 %v1859
    %1895 = vmatmul.f32.gmra.mxu0 %v1858
    %v1896 = vpop.f32.mrf.mxu0
    %v1897 = vadd.f32 %v1877, %v1896
    %1898 = vdwg.mxu0
    %vm1899 = vcmask 17408
    %1900 = vst.msk [vmem:[#allocation17] sm:$0x3] %vm1899, %v1897
    // Predicated region
    $region126: #{bfgnn_forward.1} parent=1 // pred_check
      _
    $region127: #{bfgnn_forward.1} parent=1 // pred_check_branch
      %1902 = sbr.rel (0) target = $region129
    $region128: #{bfgnn_forward.1} parent=1 // pred_region
      %1904 = vsyncadd [#allocation4], 0
      %s1906 = sshll.u32 [#allocation17], 4
      %s1907 = int_to_ptr.vmem [resolvable:$true] %s1906
      %s1908 = sshll.u32 %s22, 4
      %s1909 = int_to_ptr.hbm [resolvable:$true] %s1908
      %1911 = dma.vmem_to_hbm [thread:$0]  %s1907, 32, %s1909, [#allocation4]
    $region129: #{bfgnn_forward.1} parent=1 // pred_fallthru
      _
    // Predicated region
    $region130: #{bfgnn_forward.1} parent=1 // pred_check
      _
    $region131: #{bfgnn_forward.1} parent=1 // pred_check_branch
      %1913 = sbr.rel (0) target = $region133
    $region132: #{bfgnn_forward.1} parent=1 // pred_region
      %1915 = dma.done [#allocation4], 32
    $region133: #{bfgnn_forward.1} parent=1 // pred_fallthru
      _
    %1916 = vsyncpa [#allocation3], 1
    %1917 = vsyncpa [#allocation6], 1
    %1918 = vsyncpa [#allocation9], 1
    %1919 = vsyncpa [#allocation12], 1
    %1920 = vsyncpa [#allocation15], 1
    %1921 = vsyncpa [#allocation4], 1

</llo_original>
